<compile_context>
chip_gen: v6e
topology: v6e:2x2x1
jax: 0.10.0
libtpu: 0.0.40
codegen_flags: <defaults>
</compile_context>

<pallas_src>
import functools

import jax
import jax.numpy as jnp
from jax.experimental import pallas as pl
from jax.experimental.pallas import tpu as pltpu

EPS = 1e-5  # nn.BatchNorm2d default eps
_VMEM_LIMIT = 48 * 1024 * 1024  # fits the tile budget on v5e/v6e and v7x (64 MiB VMEM)


def _round_up(x, m):
    return ((x + m - 1) // m) * m


def _pad2(a, rows, cols):
    return jnp.pad(a, ((0, rows - a.shape[0]), (0, cols - a.shape[1])))


# ---------------------------------------------------------------------------
# Pass 1: tiled conv-as-matmul (+bias) + per-tile BatchNorm partial statistics
# ---------------------------------------------------------------------------
def _matmul_stats_kernel(p_ref, w_ref, b_ref, o_ref, stats_ref, acc_ref,
                         *, tile_m, m_actual, need_mask):
    k = pl.program_id(1)

    @pl.when(k == 0)
    def _():
        acc_ref[...] = jnp.zeros_like(acc_ref)

    acc_ref[...] += jnp.dot(p_ref[...], w_ref[...],
                            preferred_element_type=jnp.float32)

    @pl.when(k == pl.num_programs(1) - 1)
    def _():
        y = acc_ref[...] + b_ref[...]          # conv output (+ conv bias)
        o_ref[...] = y

        # Per-channel partial sum / sum-of-squares for train-mode BatchNorm.
        if need_mask:  # ignore rows that only exist because M was padded
            i = pl.program_id(0)
            row = jax.lax.broadcasted_iota(jnp.int32, y.shape, 0) + i * tile_m
            ym = jnp.where(row < m_actual, y, 0.0)
        else:
            ym = y
        s = jnp.sum(ym, axis=0, keepdims=True)        # (1, C)
        sq = jnp.sum(ym * y, axis=0, keepdims=True)   # (1, C) == sum(mask * y^2)
        ridx = jax.lax.broadcasted_iota(jnp.int32, (8, y.shape[1]), 0)
        stats_ref[...] = jnp.where(ridx == 0, s, jnp.where(ridx == 1, sq, 0.0))


def _matmul_bn_stats(patches, w_mat, bias, *, tile_m, tile_k, m_actual):
    """patches [Mp, Kp] bf16, w_mat [Kp, C] bf16, bias [1, C] f32 ->
       (conv_out [Mp, C] f32, stats [nm*8, C] f32; per tile row0=sum, row1=sumsq)."""
    Mp, Kp = patches.shape
    C = w_mat.shape[1]
    nm, nk = Mp // tile_m, Kp // tile_k
    kernel = functools.partial(_matmul_stats_kernel, tile_m=tile_m,
                               m_actual=m_actual, need_mask=(m_actual != Mp))
    return pl.pallas_call(
        kernel,
        out_shape=(jax.ShapeDtypeStruct((Mp, C), jnp.float32),
                   jax.ShapeDtypeStruct((nm * 8, C), jnp.float32)),
        grid_spec=pltpu.PrefetchScalarGridSpec(
            num_scalar_prefetch=0,
            grid=(nm, nk),
            in_specs=[
                pl.BlockSpec((tile_m, tile_k), lambda i, k: (i, k)),
                pl.BlockSpec((tile_k, C), lambda i, k: (k, 0)),
                pl.BlockSpec((1, C), lambda i, k: (0, 0)),
            ],
            out_specs=(
                pl.BlockSpec((tile_m, C), lambda i, k: (i, 0)),
                pl.BlockSpec((8, C), lambda i, k: (i, 0)),
            ),
            scratch_shapes=[pltpu.VMEM((tile_m, C), jnp.float32)],
        ),
        compiler_params=pltpu.CompilerParams(
            dimension_semantics=("parallel", "arbitrary"),
            vmem_limit_bytes=_VMEM_LIMIT,
        ),
    )(patches, w_mat, bias)


# ---------------------------------------------------------------------------
# Pass 2: tiled BN affine (+ residual) (+ per-channel-masked ReLU) epilogue
# ---------------------------------------------------------------------------
def _bn_apply_kernel(*refs, has_residual):
    if has_residual:
        y_ref, scale_ref, shift_ref, mask_ref, r_ref, o_ref = refs
    else:
        y_ref, scale_ref, shift_ref, mask_ref, o_ref = refs
    y = y_ref[...] * scale_ref[...] + shift_ref[...]
    if has_residual:
        y = y + r_ref[...]
    o_ref[...] = jnp.where(mask_ref[...] > 0.0, jnp.maximum(y, 0.0), y)


def _bn_apply(conv_out, scale, shift, relu_mask, residual, *, tile_m):
    Mp, C = conv_out.shape
    nm = Mp // tile_m
    args = [conv_out, scale, shift, relu_mask]
    in_specs = [
        pl.BlockSpec((tile_m, C), lambda i: (i, 0)),
        pl.BlockSpec((1, C), lambda i: (0, 0)),
        pl.BlockSpec((1, C), lambda i: (0, 0)),
        pl.BlockSpec((1, C), lambda i: (0, 0)),
    ]
    if residual is not None:
        args.append(residual)
        in_specs.append(pl.BlockSpec((tile_m, C), lambda i: (i, 0)))
    kernel = functools.partial(_bn_apply_kernel,
                               has_residual=residual is not None)
    return pl.pallas_call(
        kernel,
        out_shape=jax.ShapeDtypeStruct((Mp, C), jnp.float32),
        grid_spec=pltpu.PrefetchScalarGridSpec(
            num_scalar_prefetch=0,
            grid=(nm,),
            in_specs=in_specs,
            out_specs=pl.BlockSpec((tile_m, C), lambda i: (i, 0)),
        ),
        compiler_params=pltpu.CompilerParams(
            dimension_semantics=("parallel",),
            vmem_limit_bytes=_VMEM_LIMIT,
        ),
    )(*args)


# ---------------------------------------------------------------------------
# Fused conv(+bias) + train-mode BN (+residual) (+ReLU) for one or more
# output-channel groups that share the same im2col patches.
# ---------------------------------------------------------------------------
def _fused_conv_bn(patches, weight_mats, biases, gammas, betas, relu_flags,
                   residual=None):
    M, Kd = patches.shape
    Cout = weight_mats[0].shape[1]
    G = len(weight_mats)
    Cp = _round_up(Cout, 128)          # lane-dense channel padding
    C = G * Cp

    tile_m = min(512, _round_up(M, 16))
    Mp = _round_up(M, tile_m)
    tile_k = min(512, _round_up(Kd, 128))
    Kp = _round_up(Kd, tile_k)

    p_pad = _pad2(patches, Mp, Kp).astype(jnp.bfloat16)
    w_pad = jnp.concatenate(
        [_pad2(w, Kp, Cp) for w in weight_mats], axis=1).astype(jnp.bfloat16)
    b_pad = jnp.concatenate(
        [jnp.pad(b, (0, Cp - Cout)) for b in biases]).astype(jnp.float32)[None, :]

    conv_out, stats = _matmul_bn_stats(p_pad, w_pad, b_pad, tile_m=tile_m,
                                       tile_k=tile_k, m_actual=M)

    # Tiny per-channel reduction of the per-tile partials (plain JAX; O(tiles*C)).
    st = stats.reshape(-1, 8, C).sum(axis=0)          # rows 0/1 carry sum / sumsq
    mean = st[0] / M
    var = jnp.maximum(st[1] / M - mean * mean, 0.0)   # biased variance (training BN)
    gamma_p = jnp.concatenate([jnp.pad(g, (0, Cp - Cout)) for g in gammas])
    beta_p = jnp.concatenate([jnp.pad(b, (0, Cp - Cout)) for b in betas])
    scale_v = gamma_p * jax.lax.rsqrt(var + EPS)
    scale = scale_v[None, :]
    shift = (beta_p - mean * scale_v)[None, :]

    relu_mask = jnp.concatenate(
        [jnp.full((Cp,), 1.0 if f else 0.0, jnp.float32) for f in relu_flags])[None, :]

    resid_p = None
    if residual is not None:
        resid_p = _pad2(residual.astype(jnp.float32), Mp, C)

    y = _bn_apply(conv_out, scale, shift, relu_mask, resid_p, tile_m=tile_m)
    return [y[:M, g * Cp: g * Cp + Cout] for g in range(G)]


# ---------------------------------------------------------------------------
# Glue: im2col patch extraction and weight re-layout (plain JAX)
# ---------------------------------------------------------------------------
def _im2col(x_nhwc, k, stride, pad):
    # TODO(synk): replace the materialized im2col (k*k HBM amplification) with a
    # spatially-tiled conv kernel that DMAs NHWC rows + halo directly into VMEM.
    N, H, W, C = x_nhwc.shape
    xp = jnp.pad(x_nhwc, ((0, 0), (pad, pad), (pad, pad), (0, 0)))
    Ho = (H + 2 * pad - k) // stride + 1
    Wo = (W + 2 * pad - k) // stride + 1
    cols = []
    for kh in range(k):
        for kw in range(k):
            cols.append(
                xp[:, kh:kh + stride * Ho:stride, kw:kw + stride * Wo:stride, :])
    patches = jnp.stack(cols, axis=3)                 # [N, Ho, Wo, k*k, C]
    return patches.reshape(N * Ho * Wo, k * k * C), Ho, Wo


def _torch_weight_to_mat(w):
    # torch Conv2d weight [Cout, Cin, kh, kw] -> [kh*kw*Cin, Cout] (im2col order)
    Cout, Cin, kh, kw = w.shape
    return jnp.transpose(w, (2, 3, 1, 0)).reshape(kh * kw * Cin, Cout)


def basicblock_forward(x_nchw, params, kernel_size, stride, padding):
    N, Cin, H, W = x_nchw.shape
    Cout = params["w1"].shape[0]
    # NCHW -> NHWC at the module boundary (kernels are channel-last / lane-dense).
    x = jnp.transpose(x_nchw, (0, 2, 3, 1))

    has_ds = params.get("wd") is not None

    # conv1 (+ fused downsample conv: identical k/stride/pad -> shares the patches)
    p1, Ho, Wo = _im2col(x.astype(jnp.bfloat16), kernel_size, stride, padding)
    if has_ds:
        out1, resid = _fused_conv_bn(
            p1,
            [_torch_weight_to_mat(params["w1"]), _torch_weight_to_mat(params["wd"])],
            [params["b1"], params["bd"]],
            [params["g1"], params["gd"]],
            [params["be1"], params["bed"]],
            [True, False])                      # ReLU only on the conv1 half
    else:
        (out1,) = _fused_conv_bn(
            p1, [_torch_weight_to_mat(params["w1"])], [params["b1"]],
            [params["g1"]], [params["be1"]], [True])
        # identity skip; valid exactly when the nn.Module omits the downsample
        resid = x.reshape(N * H * W, Cin)

    out1_img = out1.reshape(N, Ho, Wo, Cout)

    # conv2 + bn2 + residual add + relu
    p2, Ho2, Wo2 = _im2col(out1_img.astype(jnp.bfloat16), kernel_size, 1, padding)
    (out2,) = _fused_conv_bn(
        p2, [_torch_weight_to_mat(params["w2"])], [params["b2"]],
        [params["g2"]], [params["be2"]], [True], residual=resid)
    out_img = out2.reshape(N, Ho2, Wo2, Cout)
    return jnp.transpose(out_img, (0, 3, 1, 2))       # back to NCHW


# ---------------------------------------------------------------------------
# Pure-JAX reference (same bf16-input / f32-accumulate precision for the convs)
# ---------------------------------------------------------------------------
def _ref_conv(x_nhwc, w_torch, b, stride, pad):
    w_hwio = jnp.transpose(w_torch, (2, 3, 1, 0))
    y = jax.lax.conv_general_dilated(
        x_nhwc.astype(jnp.bfloat16), w_hwio.astype(jnp.bfloat16),
        (stride, stride), ((pad, pad), (pad, pad)),
        dimension_numbers=("NHWC", "HWIO", "NHWC"),
        preferred_element_type=jnp.float32)
    return y + b


def _ref_bn(y, g, be):
    mean = jnp.mean(y, axis=(0, 1, 2), keepdims=True)
    var = jnp.mean(jnp.square(y - mean), axis=(0, 1, 2), keepdims=True)
    return (y - mean) * jax.lax.rsqrt(var + EPS) * g + be


if __name__ == "__main__":
    key = jax.random.PRNGKey(0)
    N, Cin, H, W = 2, 4, 16, 16
    Cout, K, stride, pad = 8, 3, 2, 1  # stride!=1 and Cin!=Cout -> downsample branch

    keys = jax.random.split(key, 12)
    x = jax.random.normal(keys[0], (N, Cin, H, W), jnp.float32)
    params = {
        "w1": 0.1 * jax.random.normal(keys[1], (Cout, Cin, K, K), jnp.float32),
        "b1": 0.1 * jax.random.normal(keys[2], (Cout,), jnp.float32),
        "g1": 1.0 + 0.1 * jax.random.normal(keys[3], (Cout,), jnp.float32),
        "be1": 0.1 * jax.random.normal(keys[4], (Cout,), jnp.float32),
        "w2": 0.1 * jax.random.normal(keys[5], (Cout, Cout, K, K), jnp.float32),
        "b2": 0.1 * jax.random.normal(keys[6], (Cout,), jnp.float32),
        "g2": 1.0 + 0.1 * jax.random.normal(keys[7], (Cout,), jnp.float32),
        "be2": 0.1 * jax.random.normal(keys[8], (Cout,), jnp.float32),
        "wd": 0.1 * jax.random.normal(keys[9], (Cout, Cin, K, K), jnp.float32),
        "bd": 0.1 * jax.random.normal(keys[10], (Cout,), jnp.float32),
        "gd": 1.0 + 0.05 * jax.random.normal(keys[11], (Cout,), jnp.float32),
        "bed": jnp.zeros((Cout,), jnp.float32),
    }

    fwd = jax.jit(basicblock_forward, static_argnums=(2, 3, 4))
    out = jax.block_until_ready(fwd(x, params, K, stride, pad))

    # correctness check against a pure-JAX reference
    xh = jnp.transpose(x, (0, 2, 3, 1))
    r1 = jnp.maximum(
        _ref_bn(_ref_conv(xh, params["w1"], params["b1"], stride, pad),
                params["g1"], params["be1"]), 0.0)
    rid = _ref_bn(_ref_conv(xh, params["wd"], params["bd"], stride, pad),
                  params["gd"], params["bed"])
    r2 = jnp.maximum(
        _ref_bn(_ref_conv(r1, params["w2"], params["b2"], 1, pad),
                params["g2"], params["be2"]) + rid, 0.0)
    r2 = jnp.transpose(r2, (0, 3, 1, 2))
    assert out.shape == r2.shape
    assert jnp.allclose(out, r2, atol=5e-3, rtol=5e-3)

    print("KERNEL_OK")
</pallas_src>

<mosaic_0001>
module attributes {stable_mosaic.version = 11 : i64} {
  func.func @_bn_apply_kernel(%arg0: i32, %arg1: memref<128x256xf32, #tpu.memory_space<vmem>>, %arg2: memref<1x256xf32, #tpu.memory_space<vmem>>, %arg3: memref<1x256xf32, #tpu.memory_space<vmem>>, %arg4: memref<1x256xf32, #tpu.memory_space<vmem>>, %arg5: memref<128x256xf32, #tpu.memory_space<vmem>>) attributes {dimension_semantics = [#tpu.dimension_semantics<parallel>], iteration_bounds = array<i64: 1>, scalar_prefetch = 0 : i64, scratch_operands = 0 : i64, tpu.core_type = #tpu.core_type<tc>, window_params = [{transform_indices = @transform_0, window_bounds = array<i64: 128, 256>}, {pipeline_mode = #tpu.pipeline_mode<synchronous>, transform_indices = @transform_1, window_bounds = array<i64: 1, 256>}, {pipeline_mode = #tpu.pipeline_mode<synchronous>, transform_indices = @transform_2, window_bounds = array<i64: 1, 256>}, {pipeline_mode = #tpu.pipeline_mode<synchronous>, transform_indices = @transform_3, window_bounds = array<i64: 1, 256>}, {transform_indices = @transform_4, window_bounds = array<i64: 128, 256>}]} {
    %c0 = arith.constant 0 : index
    %c0_0 = arith.constant 0 : index
    %0 = vector.load %arg1[%c0, %c0_0] : memref<128x256xf32, #tpu.memory_space<vmem>>, vector<128x256xf32>
    %c0_1 = arith.constant 0 : index
    %c0_2 = arith.constant 0 : index
    %1 = vector.load %arg2[%c0_1, %c0_2] : memref<1x256xf32, #tpu.memory_space<vmem>>, vector<1x256xf32>
    %2 = vector.broadcast %1 : vector<1x256xf32> to vector<128x256xf32>
    %3 = arith.mulf %0, %2 : vector<128x256xf32>
    %c0_3 = arith.constant 0 : index
    %c0_4 = arith.constant 0 : index
    %4 = vector.load %arg3[%c0_3, %c0_4] : memref<1x256xf32, #tpu.memory_space<vmem>>, vector<1x256xf32>
    %5 = vector.broadcast %4 : vector<1x256xf32> to vector<128x256xf32>
    %6 = arith.addf %3, %5 : vector<128x256xf32>
    %c0_5 = arith.constant 0 : index
    %c0_6 = arith.constant 0 : index
    %7 = vector.load %arg4[%c0_5, %c0_6] : memref<1x256xf32, #tpu.memory_space<vmem>>, vector<1x256xf32>
    %cst = arith.constant 0.000000e+00 : f32
    %8 = vector.broadcast %cst : f32 to vector<1x256xf32>
    %9 = arith.cmpf ogt, %7, %8 : vector<1x256xf32>
    %cst_7 = arith.constant 0.000000e+00 : f32
    %10 = vector.broadcast %cst_7 : f32 to vector<128x256xf32>
    %11 = arith.maximumf %6, %10 : vector<128x256xf32>
    %12 = vector.shape_cast %9 : vector<1x256xi1> to vector<1x256xi1>
    %13 = vector.broadcast %12 : vector<1x256xi1> to vector<128x256xi1>
    %14 = arith.select %13, %11, %6 : vector<128x256xi1>, vector<128x256xf32>
    %c0_8 = arith.constant 0 : index
    %c0_9 = arith.constant 0 : index
    %15 = vector.load %arg5[%c0_8, %c0_9] : memref<128x256xf32, #tpu.memory_space<vmem>>, vector<128x256xf32>
    tpu.vector_store %arg5[%c0_8, %c0_9], %14 {strides = array<i32>} : memref<128x256xf32, #tpu.memory_space<vmem>>, vector<128x256xf32>,
    return
  }
  func.func @transform_0(%arg0: i32) -> (i32, i32) {
    %c0_i32 = arith.constant 0 : i32
    %c0_i32_0 = arith.constant 0 : i32
    return %arg0, %c0_i32 : i32, i32
  }
  func.func @transform_1(%arg0: i32) -> (i32, i32) {
    %c0_i32 = arith.constant 0 : i32
    %c0_i32_0 = arith.constant 0 : i32
    %c0_i32_1 = arith.constant 0 : i32
    return %c0_i32, %c0_i32_0 : i32, i32
  }
  func.func @transform_2(%arg0: i32) -> (i32, i32) {
    %c0_i32 = arith.constant 0 : i32
    %c0_i32_0 = arith.constant 0 : i32
    %c0_i32_1 = arith.constant 0 : i32
    return %c0_i32, %c0_i32_0 : i32, i32
  }
  func.func @transform_3(%arg0: i32) -> (i32, i32) {
    %c0_i32 = arith.constant 0 : i32
    %c0_i32_0 = arith.constant 0 : i32
    %c0_i32_1 = arith.constant 0 : i32
    return %c0_i32, %c0_i32_0 : i32, i32
  }
  func.func @transform_4(%arg0: i32) -> (i32, i32) {
    %c0_i32 = arith.constant 0 : i32
    %c0_i32_0 = arith.constant 0 : i32
    return %arg0, %c0_i32 : i32, i32
  }
}

module attributes {stable_mosaic.version = 11 : i64} {
  func.func @_matmul_stats_kernel(%arg0: i32, %arg1: i32, %arg2: memref<128x128xbf16, #tpu.memory_space<vmem>>, %arg3: memref<128x256xbf16, #tpu.memory_space<vmem>>, %arg4: memref<1x256xf32, #tpu.memory_space<vmem>>, %arg5: memref<128x256xf32, #tpu.memory_space<vmem>>, %arg6: memref<8x256xf32, #tpu.memory_space<vmem>>, %arg7: memref<128x256xf32, #tpu.memory_space<vmem>>) attributes {dimension_semantics = [#tpu.dimension_semantics<parallel>, #tpu.dimension_semantics<arbitrary>], iteration_bounds = array<i64: 1, 1>, scalar_prefetch = 0 : i64, scratch_operands = 1 : i64, tpu.core_type = #tpu.core_type<tc>, window_params = [{transform_indices = @transform_0, window_bounds = array<i64: 128, 128>}, {transform_indices = @transform_1, window_bounds = array<i64: 128, 256>}, {pipeline_mode = #tpu.pipeline_mode<synchronous>, transform_indices = @transform_2, window_bounds = array<i64: 1, 256>}, {transform_indices = @transform_3, window_bounds = array<i64: 128, 256>}, {transform_indices = @transform_4, window_bounds = array<i64: 8, 256>}]} {
    %c0_i32 = arith.constant 0 : i32
    %0 = arith.cmpi eq, %arg1, %c0_i32 : i32
    %1 = arith.extui %0 : i1 to i32
    %c0_i32_0 = arith.constant 0 : i32
    %2 = arith.cmpi ne, %1, %c0_i32_0 : i32
    scf.if %2 {
      %cst_10 = arith.constant 0.000000e+00 : f32
      %12 = vector.broadcast %cst_10 : f32 to vector<128x256xf32>
      %c0_11 = arith.constant 0 : index
      %c0_12 = arith.constant 0 : index
      %13 = vector.load %arg7[%c0_11, %c0_12] : memref<128x256xf32, #tpu.memory_space<vmem>>, vector<128x256xf32>
      tpu.vector_store %arg7[%c0_11, %c0_12], %12 {strides = array<i32>} : memref<128x256xf32, #tpu.memory_space<vmem>>, vector<128x256xf32>,
    } else {
    }
    %c0 = arith.constant 0 : index
    %c0_1 = arith.constant 0 : index
    %3 = vector.load %arg7[%c0, %c0_1] : memref<128x256xf32, #tpu.memory_space<vmem>>, vector<128x256xf32>
    %c0_2 = arith.constant 0 : index
    %c0_3 = arith.constant 0 : index
    %4 = vector.load %arg2[%c0_2, %c0_3] : memref<128x128xbf16, #tpu.memory_space<vmem>>, vector<128x128xbf16>
    %c0_4 = arith.constant 0 : index
    %c0_5 = arith.constant 0 : index
    %5 = vector.load %arg3[%c0_4, %c0_5] : memref<128x256xbf16, #tpu.memory_space<vmem>>, vector<128x256xbf16>
    %cst = arith.constant dense<0.000000e+00> : vector<128x256xf32>
    %6 = tpu.matmul %4, %5, %cst {dimension_numbers = #tpu.dot_dimension_numbers<[1], [0], [0], [1], [0, 0, 1, 1], [], []>} : vector<128x128xbf16>, vector<128x256xbf16>, vector<128x256xf32> -> vector<128x256xf32>
    %7 = arith.addf %3, %6 : vector<128x256xf32>
    %c0_6 = arith.constant 0 : index
    %c0_7 = arith.constant 0 : index
    %8 = vector.load %arg7[%c0_6, %c0_7] : memref<128x256xf32, #tpu.memory_space<vmem>>, vector<128x256xf32>
    tpu.vector_store %arg7[%c0_6, %c0_7], %7 {strides = array<i32>} : memref<128x256xf32, #tpu.memory_space<vmem>>, vector<128x256xf32>,
    %c0_i32_8 = arith.constant 0 : i32
    %9 = arith.cmpi eq, %arg1, %c0_i32_8 : i32
    %10 = arith.extui %9 : i1 to i32
    %c0_i32_9 = arith.constant 0 : i32
    %11 = arith.cmpi ne, %10, %c0_i32_9 : i32
    scf.if %11 {
      %c0_10 = arith.constant 0 : index
      %c0_11 = arith.constant 0 : index
      %12 = vector.load %arg7[%c0_10, %c0_11] : memref<128x256xf32, #tpu.memory_space<vmem>>, vector<128x256xf32>
      %c0_12 = arith.constant 0 : index
      %c0_13 = arith.constant 0 : index
      %13 = vector.load %arg4[%c0_12, %c0_13] : memref<1x256xf32, #tpu.memory_space<vmem>>, vector<1x256xf32>
      %14 = vector.broadcast %13 : vector<1x256xf32> to vector<128x256xf32>
      %15 = arith.addf %12, %14 : vector<128x256xf32>
      %c0_14 = arith.constant 0 : index
      %c0_15 = arith.constant 0 : index
      %16 = vector.load %arg5[%c0_14, %c0_15] : memref<128x256xf32, #tpu.memory_space<vmem>>, vector<128x256xf32>
      tpu.vector_store %arg5[%c0_14, %c0_15], %15 {strides = array<i32>} : memref<128x256xf32, #tpu.memory_space<vmem>>, vector<128x256xf32>,
      %cst_16 = arith.constant dense<0.000000e+00> : vector<256xf32>
      %17 = vector.multi_reduction <add>, %15, %cst_16 [0] : vector<128x256xf32> to vector<256xf32>
      %18 = vector.shape_cast %17 : vector<256xf32> to vector<1x256xf32>
      %19 = arith.mulf %15, %15 : vector<128x256xf32>
      %cst_17 = arith.constant dense<0.000000e+00> : vector<256xf32>
      %20 = vector.multi_reduction <add>, %19, %cst_17 [0] : vector<128x256xf32> to vector<256xf32>
      %21 = vector.shape_cast %20 : vector<256xf32> to vector<1x256xf32>
      %22 = tpu.iota {dimensions = array<i32: 0>} : vector<8x256xi32>
      %c0_i32_18 = arith.constant 0 : i32
      %23 = vector.broadcast %c0_i32_18 : i32 to vector<8x256xi32>
      %24 = arith.cmpi eq, %22, %23 : vector<8x256xi32>
      %c1_i32 = arith.constant 1 : i32
      %25 = vector.broadcast %c1_i32 : i32 to vector<8x256xi32>
      %26 = arith.cmpi eq, %22, %25 : vector<8x256xi32>
      %cst_19 = arith.constant 0.000000e+00 : f32
      %27 = vector.shape_cast %21 : vector<1x256xf32> to vector<1x256xf32>
      %28 = vector.broadcast %27 : vector<1x256xf32> to vector<8x256xf32>
      %29 = vector.broadcast %cst_19 : f32 to vector<8x256xf32>
      %30 = arith.select %26, %28, %29 : vector<8x256xi1>, vector<8x256xf32>
      %31 = vector.shape_cast %18 : vector<1x256xf32> to vector<1x256xf32>
      %32 = vector.broadcast %31 : vector<1x256xf32> to vector<8x256xf32>
      %33 = arith.select %24, %32, %30 : vector<8x256xi1>, vector<8x256xf32>
      %c0_20 = arith.constant 0 : index
      %c0_21 = arith.constant 0 : index
      %34 = vector.load %arg6[%c0_20, %c0_21] : memref<8x256xf32, #tpu.memory_space<vmem>>, vector<8x256xf32>
      tpu.vector_store %arg6[%c0_20, %c0_21], %33 {strides = array<i32>} : memref<8x256xf32, #tpu.memory_space<vmem>>, vector<8x256xf32>,
    } else {
    }
    return
  }
  func.func @transform_0(%arg0: i32, %arg1: i32) -> (i32, i32) {
    %c0_i32 = arith.constant 0 : i32
    return %arg0, %arg1 : i32, i32
  }
  func.func @transform_1(%arg0: i32, %arg1: i32) -> (i32, i32) {
    %c0_i32 = arith.constant 0 : i32
    %c0_i32_0 = arith.constant 0 : i32
    return %arg1, %c0_i32 : i32, i32
  }
  func.func @transform_2(%arg0: i32, %arg1: i32) -> (i32, i32) {
    %c0_i32 = arith.constant 0 : i32
    %c0_i32_0 = arith.constant 0 : i32
    %c0_i32_1 = arith.constant 0 : i32
    return %c0_i32, %c0_i32_0 : i32, i32
  }
  func.func @transform_3(%arg0: i32, %arg1: i32) -> (i32, i32) {
    %c0_i32 = arith.constant 0 : i32
    %c0_i32_0 = arith.constant 0 : i32
    return %arg0, %c0_i32 : i32, i32
  }
  func.func @transform_4(%arg0: i32, %arg1: i32) -> (i32, i32) {
    %c0_i32 = arith.constant 0 : i32
    %c0_i32_0 = arith.constant 0 : i32
    return %arg0, %c0_i32 : i32, i32
  }
}

module attributes {stable_mosaic.version = 11 : i64} {
  func.func @_matmul_stats_kernel(%arg0: i32, %arg1: i32, %arg2: memref<128x128xbf16, #tpu.memory_space<vmem>>, %arg3: memref<128x128xbf16, #tpu.memory_space<vmem>>, %arg4: memref<1x128xf32, #tpu.memory_space<vmem>>, %arg5: memref<128x128xf32, #tpu.memory_space<vmem>>, %arg6: memref<8x128xf32, #tpu.memory_space<vmem>>, %arg7: memref<128x128xf32, #tpu.memory_space<vmem>>) attributes {dimension_semantics = [#tpu.dimension_semantics<parallel>, #tpu.dimension_semantics<arbitrary>], iteration_bounds = array<i64: 1, 1>, scalar_prefetch = 0 : i64, scratch_operands = 1 : i64, tpu.core_type = #tpu.core_type<tc>, window_params = [{transform_indices = @transform_0, window_bounds = array<i64: 128, 128>}, {transform_indices = @transform_1, window_bounds = array<i64: 128, 128>}, {pipeline_mode = #tpu.pipeline_mode<synchronous>, transform_indices = @transform_2, window_bounds = array<i64: 1, 128>}, {transform_indices = @transform_3, window_bounds = array<i64: 128, 128>}, {transform_indices = @transform_4, window_bounds = array<i64: 8, 128>}]} {
    %c0_i32 = arith.constant 0 : i32
    %0 = arith.cmpi eq, %arg1, %c0_i32 : i32
    %1 = arith.extui %0 : i1 to i32
    %c0_i32_0 = arith.constant 0 : i32
    %2 = arith.cmpi ne, %1, %c0_i32_0 : i32
    scf.if %2 {
      %cst_10 = arith.constant 0.000000e+00 : f32
      %12 = vector.broadcast %cst_10 : f32 to vector<128x128xf32>
      %c0_11 = arith.constant 0 : index
      %c0_12 = arith.constant 0 : index
      %13 = vector.load %arg7[%c0_11, %c0_12] : memref<128x128xf32, #tpu.memory_space<vmem>>, vector<128x128xf32>
      tpu.vector_store %arg7[%c0_11, %c0_12], %12 {strides = array<i32>} : memref<128x128xf32, #tpu.memory_space<vmem>>, vector<128x128xf32>,
    } else {
    }
    %c0 = arith.constant 0 : index
    %c0_1 = arith.constant 0 : index
    %3 = vector.load %arg7[%c0, %c0_1] : memref<128x128xf32, #tpu.memory_space<vmem>>, vector<128x128xf32>
    %c0_2 = arith.constant 0 : index
    %c0_3 = arith.constant 0 : index
    %4 = vector.load %arg2[%c0_2, %c0_3] : memref<128x128xbf16, #tpu.memory_space<vmem>>, vector<128x128xbf16>
    %c0_4 = arith.constant 0 : index
    %c0_5 = arith.constant 0 : index
    %5 = vector.load %arg3[%c0_4, %c0_5] : memref<128x128xbf16, #tpu.memory_space<vmem>>, vector<128x128xbf16>
    %cst = arith.constant dense<0.000000e+00> : vector<128x128xf32>
    %6 = tpu.matmul %4, %5, %cst {dimension_numbers = #tpu.dot_dimension_numbers<[1], [0], [0], [1], [0, 0, 1, 1], [], []>} : vector<128x128xbf16>, vector<128x128xbf16>, vector<128x128xf32> -> vector<128x128xf32>
    %7 = arith.addf %3, %6 : vector<128x128xf32>
    %c0_6 = arith.constant 0 : index
    %c0_7 = arith.constant 0 : index
    %8 = vector.load %arg7[%c0_6, %c0_7] : memref<128x128xf32, #tpu.memory_space<vmem>>, vector<128x128xf32>
    tpu.vector_store %arg7[%c0_6, %c0_7], %7 {strides = array<i32>} : memref<128x128xf32, #tpu.memory_space<vmem>>, vector<128x128xf32>,
    %c0_i32_8 = arith.constant 0 : i32
    %9 = arith.cmpi eq, %arg1, %c0_i32_8 : i32
    %10 = arith.extui %9 : i1 to i32
    %c0_i32_9 = arith.constant 0 : i32
    %11 = arith.cmpi ne, %10, %c0_i32_9 : i32
    scf.if %11 {
      %c0_10 = arith.constant 0 : index
      %c0_11 = arith.constant 0 : index
      %12 = vector.load %arg7[%c0_10, %c0_11] : memref<128x128xf32, #tpu.memory_space<vmem>>, vector<128x128xf32>
      %c0_12 = arith.constant 0 : index
      %c0_13 = arith.constant 0 : index
      %13 = vector.load %arg4[%c0_12, %c0_13] : memref<1x128xf32, #tpu.memory_space<vmem>>, vector<1x128xf32>
      %14 = vector.broadcast %13 : vector<1x128xf32> to vector<128x128xf32>
      %15 = arith.addf %12, %14 : vector<128x128xf32>
      %c0_14 = arith.constant 0 : index
      %c0_15 = arith.constant 0 : index
      %16 = vector.load %arg5[%c0_14, %c0_15] : memref<128x128xf32, #tpu.memory_space<vmem>>, vector<128x128xf32>
      tpu.vector_store %arg5[%c0_14, %c0_15], %15 {strides = array<i32>} : memref<128x128xf32, #tpu.memory_space<vmem>>, vector<128x128xf32>,
      %cst_16 = arith.constant dense<0.000000e+00> : vector<128xf32>
      %17 = vector.multi_reduction <add>, %15, %cst_16 [0] : vector<128x128xf32> to vector<128xf32>
      %18 = vector.shape_cast %17 : vector<128xf32> to vector<1x128xf32>
      %19 = arith.mulf %15, %15 : vector<128x128xf32>
      %cst_17 = arith.constant dense<0.000000e+00> : vector<128xf32>
      %20 = vector.multi_reduction <add>, %19, %cst_17 [0] : vector<128x128xf32> to vector<128xf32>
      %21 = vector.shape_cast %20 : vector<128xf32> to vector<1x128xf32>
      %22 = tpu.iota {dimensions = array<i32: 0>} : vector<8x128xi32>
      %c0_i32_18 = arith.constant 0 : i32
      %23 = vector.broadcast %c0_i32_18 : i32 to vector<8x128xi32>
      %24 = arith.cmpi eq, %22, %23 : vector<8x128xi32>
      %c1_i32 = arith.constant 1 : i32
      %25 = vector.broadcast %c1_i32 : i32 to vector<8x128xi32>
      %26 = arith.cmpi eq, %22, %25 : vector<8x128xi32>
      %cst_19 = arith.constant 0.000000e+00 : f32
      %27 = vector.shape_cast %21 : vector<1x128xf32> to vector<1x128xf32>
      %28 = vector.broadcast %27 : vector<1x128xf32> to vector<8x128xf32>
      %29 = vector.broadcast %cst_19 : f32 to vector<8x128xf32>
      %30 = arith.select %26, %28, %29 : vector<8x128xi1>, vector<8x128xf32>
      %31 = vector.shape_cast %18 : vector<1x128xf32> to vector<1x128xf32>
      %32 = vector.broadcast %31 : vector<1x128xf32> to vector<8x128xf32>
      %33 = arith.select %24, %32, %30 : vector<8x128xi1>, vector<8x128xf32>
      %c0_20 = arith.constant 0 : index
      %c0_21 = arith.constant 0 : index
      %34 = vector.load %arg6[%c0_20, %c0_21] : memref<8x128xf32, #tpu.memory_space<vmem>>, vector<8x128xf32>
      tpu.vector_store %arg6[%c0_20, %c0_21], %33 {strides = array<i32>} : memref<8x128xf32, #tpu.memory_space<vmem>>, vector<8x128xf32>,
    } else {
    }
    return
  }
  func.func @transform_0(%arg0: i32, %arg1: i32) -> (i32, i32) {
    %c0_i32 = arith.constant 0 : i32
    return %arg0, %arg1 : i32, i32
  }
  func.func @transform_1(%arg0: i32, %arg1: i32) -> (i32, i32) {
    %c0_i32 = arith.constant 0 : i32
    %c0_i32_0 = arith.constant 0 : i32
    return %arg1, %c0_i32 : i32, i32
  }
  func.func @transform_2(%arg0: i32, %arg1: i32) -> (i32, i32) {
    %c0_i32 = arith.constant 0 : i32
    %c0_i32_0 = arith.constant 0 : i32
    %c0_i32_1 = arith.constant 0 : i32
    return %c0_i32, %c0_i32_0 : i32, i32
  }
  func.func @transform_3(%arg0: i32, %arg1: i32) -> (i32, i32) {
    %c0_i32 = arith.constant 0 : i32
    %c0_i32_0 = arith.constant 0 : i32
    return %arg0, %c0_i32 : i32, i32
  }
  func.func @transform_4(%arg0: i32, %arg1: i32) -> (i32, i32) {
    %c0_i32 = arith.constant 0 : i32
    %c0_i32_0 = arith.constant 0 : i32
    return %arg0, %c0_i32 : i32, i32
  }
}

module attributes {stable_mosaic.version = 11 : i64} {
  func.func @_bn_apply_kernel(%arg0: i32, %arg1: memref<128x128xf32, #tpu.memory_space<vmem>>, %arg2: memref<1x128xf32, #tpu.memory_space<vmem>>, %arg3: memref<1x128xf32, #tpu.memory_space<vmem>>, %arg4: memref<1x128xf32, #tpu.memory_space<vmem>>, %arg5: memref<128x128xf32, #tpu.memory_space<vmem>>, %arg6: memref<128x128xf32, #tpu.memory_space<vmem>>) attributes {dimension_semantics = [#tpu.dimension_semantics<parallel>], iteration_bounds = array<i64: 1>, scalar_prefetch = 0 : i64, scratch_operands = 0 : i64, tpu.core_type = #tpu.core_type<tc>, window_params = [{transform_indices = @transform_0, window_bounds = array<i64: 128, 128>}, {pipeline_mode = #tpu.pipeline_mode<synchronous>, transform_indices = @transform_1, window_bounds = array<i64: 1, 128>}, {pipeline_mode = #tpu.pipeline_mode<synchronous>, transform_indices = @transform_2, window_bounds = array<i64: 1, 128>}, {pipeline_mode = #tpu.pipeline_mode<synchronous>, transform_indices = @transform_3, window_bounds = array<i64: 1, 128>}, {transform_indices = @transform_4, window_bounds = array<i64: 128, 128>}, {transform_indices = @transform_5, window_bounds = array<i64: 128, 128>}]} {
    %c0 = arith.constant 0 : index
    %c0_0 = arith.constant 0 : index
    %0 = vector.load %arg1[%c0, %c0_0] : memref<128x128xf32, #tpu.memory_space<vmem>>, vector<128x128xf32>
    %c0_1 = arith.constant 0 : index
    %c0_2 = arith.constant 0 : index
    %1 = vector.load %arg2[%c0_1, %c0_2] : memref<1x128xf32, #tpu.memory_space<vmem>>, vector<1x128xf32>
    %2 = vector.broadcast %1 : vector<1x128xf32> to vector<128x128xf32>
    %3 = arith.mulf %0, %2 : vector<128x128xf32>
    %c0_3 = arith.constant 0 : index
    %c0_4 = arith.constant 0 : index
    %4 = vector.load %arg3[%c0_3, %c0_4] : memref<1x128xf32, #tpu.memory_space<vmem>>, vector<1x128xf32>
    %5 = vector.broadcast %4 : vector<1x128xf32> to vector<128x128xf32>
    %6 = arith.addf %3, %5 : vector<128x128xf32>
    %c0_5 = arith.constant 0 : index
    %c0_6 = arith.constant 0 : index
    %7 = vector.load %arg5[%c0_5, %c0_6] : memref<128x128xf32, #tpu.memory_space<vmem>>, vector<128x128xf32>
    %8 = arith.addf %6, %7 : vector<128x128xf32>
    %c0_7 = arith.constant 0 : index
    %c0_8 = arith.constant 0 : index
    %9 = vector.load %arg4[%c0_7, %c0_8] : memref<1x128xf32, #tpu.memory_space<vmem>>, vector<1x128xf32>
    %cst = arith.constant 0.000000e+00 : f32
    %10 = vector.broadcast %cst : f32 to vector<1x128xf32>
    %11 = arith.cmpf ogt, %9, %10 : vector<1x128xf32>
    %cst_9 = arith.constant 0.000000e+00 : f32
    %12 = vector.broadcast %cst_9 : f32 to vector<128x128xf32>
    %13 = arith.maximumf %8, %12 : vector<128x128xf32>
    %14 = vector.shape_cast %11 : vector<1x128xi1> to vector<1x128xi1>
    %15 = vector.broadcast %14 : vector<1x128xi1> to vector<128x128xi1>
    %16 = arith.select %15, %13, %8 : vector<128x128xi1>, vector<128x128xf32>
    %c0_10 = arith.constant 0 : index
    %c0_11 = arith.constant 0 : index
    %17 = vector.load %arg6[%c0_10, %c0_11] : memref<128x128xf32, #tpu.memory_space<vmem>>, vector<128x128xf32>
    tpu.vector_store %arg6[%c0_10, %c0_11], %16 {strides = array<i32>} : memref<128x128xf32, #tpu.memory_space<vmem>>, vector<128x128xf32>,
    return
  }
  func.func @transform_0(%arg0: i32) -> (i32, i32) {
    %c0_i32 = arith.constant 0 : i32
    %c0_i32_0 = arith.constant 0 : i32
    return %arg0, %c0_i32 : i32, i32
  }
  func.func @transform_1(%arg0: i32) -> (i32, i32) {
    %c0_i32 = arith.constant 0 : i32
    %c0_i32_0 = arith.constant 0 : i32
    %c0_i32_1 = arith.constant 0 : i32
    return %c0_i32, %c0_i32_0 : i32, i32
  }
  func.func @transform_2(%arg0: i32) -> (i32, i32) {
    %c0_i32 = arith.constant 0 : i32
    %c0_i32_0 = arith.constant 0 : i32
    %c0_i32_1 = arith.constant 0 : i32
    return %c0_i32, %c0_i32_0 : i32, i32
  }
  func.func @transform_3(%arg0: i32) -> (i32, i32) {
    %c0_i32 = arith.constant 0 : i32
    %c0_i32_0 = arith.constant 0 : i32
    %c0_i32_1 = arith.constant 0 : i32
    return %c0_i32, %c0_i32_0 : i32, i32
  }
  func.func @transform_4(%arg0: i32) -> (i32, i32) {
    %c0_i32 = arith.constant 0 : i32
    %c0_i32_0 = arith.constant 0 : i32
    return %arg0, %c0_i32 : i32, i32
  }
  func.func @transform_5(%arg0: i32) -> (i32, i32) {
    %c0_i32 = arith.constant 0 : i32
    %c0_i32_0 = arith.constant 0 : i32
    return %arg0, %c0_i32 : i32, i32
  }
}

</mosaic_0001>

<llo_original>
// kernel: basicblock_forward.5
$region0: #{basicblock_forward.5}
  #allocation0 [shape = 'u32[]', space=smem, size = 0x4, offset = 0x4, fixed_abs, tag = 'smem constant byte address 0x4 - core index']
  #allocation1 [shape = 'u32[144,128]{1,0:T(1,128)}', space=vmem, size = 0x12000, scoped, tag = 'internal scratch']
  %s0 = inlined_call_operand.vmem [shape: f32[128,256], index: 0, kind: input, shape index: {}]
  %s1 = inlined_call_operand.vmem [shape: f32[1,256], index: 1, kind: input, shape index: {}]
  %s2 = inlined_call_operand.vmem [shape: f32[1,256], index: 2, kind: input, shape index: {}]
  %s3 = inlined_call_operand.vmem [shape: f32[1,256], index: 3, kind: input, shape index: {}]
  %s4 = inlined_call_operand.vmem [shape: f32[128,256], index: 4, kind: output, shape index: {}]
  %s5 = sld [smem:[#allocation0]]
  $region26: #{basicblock_forward.5} parent=0
    _
  %s7 = ssub.s32 1, %s5
  %s8 = scalar_select 0, %s7, %s5
  // Predicated region
  $region2: #{basicblock_forward.5} parent=0 // pred_check
    _
  $region3: #{basicblock_forward.5} parent=0 // pred_check_branch
    %10 = sbr.rel (0) target = $region5
  $region4: #{basicblock_forward.5} parent=0 // pred_region
    _
  $region5: #{basicblock_forward.5} parent=0 // pred_fallthru
    _
  // Predicated region
  $region6: #{basicblock_forward.5} parent=0 // pred_check
    _
  $region7: #{basicblock_forward.5} parent=0 // pred_check_branch
    %12 = sbr.rel (0) target = $region9
  $region8: #{basicblock_forward.5} parent=0 // pred_region
    _
  $region9: #{basicblock_forward.5} parent=0 // pred_fallthru
    _
  // Predicated region
  $region10: #{basicblock_forward.5} parent=0 // pred_check
    _
  $region11: #{basicblock_forward.5} parent=0 // pred_check_branch
    %14 = sbr.rel (0) target = $region13
  $region12: #{basicblock_forward.5} parent=0 // pred_region
    _
  $region13: #{basicblock_forward.5} parent=0 // pred_fallthru
    _
  // Predicated region
  $region14: #{basicblock_forward.5} parent=0 // pred_check
    _
  $region15: #{basicblock_forward.5} parent=0 // pred_check_branch
    %16 = sbr.rel (0) target = $region17
  $region16: #{basicblock_forward.5} parent=0 // pred_region
    _
  $region17: #{basicblock_forward.5} parent=0 // pred_fallthru
    _
  %v17 = vld [vmem:[%s0] sm:$0xff]
  %v18 = vld [vmem:[%s0 + $0x8] sm:$0xff]
  %v19 = vld [vmem:[%s0 + $0x10] sm:$0xff]
  %v20 = vld [vmem:[%s0 + $0x18] sm:$0xff]
  %v21 = vld [vmem:[%s0 + $0x20] sm:$0xff]
  %v22 = vld [vmem:[%s0 + $0x28] sm:$0xff]
  %v23 = vld [vmem:[%s0 + $0x30] sm:$0xff]
  %v24 = vld [vmem:[%s0 + $0x38] sm:$0xff]
  %v25 = vld [vmem:[%s0 + $0x40] sm:$0xff]
  %v26 = vld [vmem:[%s0 + $0x48] sm:$0xff]
  %v27 = vld [vmem:[%s0 + $0x50] sm:$0xff]
  %v28 = vld [vmem:[%s0 + $0x58] sm:$0xff]
  %v29 = vld [vmem:[%s0 + $0x60] sm:$0xff]
  %v30 = vld [vmem:[%s0 + $0x68] sm:$0xff]
  %v31 = vld [vmem:[%s0 + $0x70] sm:$0xff]
  %v32 = vld [vmem:[%s0 + $0x78] sm:$0xff]
  %v33 = vld [vmem:[%s0 + $0x80] sm:$0xff]
  %v34 = vld [vmem:[%s0 + $0x88] sm:$0xff]
  %v35 = vld [vmem:[%s0 + $0x90] sm:$0xff]
  %v36 = vld [vmem:[%s0 + $0x98] sm:$0xff]
  %v37 = vld [vmem:[%s0 + $0xa0] sm:$0xff]
  %v38 = vld [vmem:[%s0 + $0xa8] sm:$0xff]
  %v39 = vld [vmem:[%s0 + $0xb0] sm:$0xff]
  %v40 = vld [vmem:[%s0 + $0xb8] sm:$0xff]
  %v41 = vld [vmem:[%s0 + $0xc0] sm:$0xff]
  %v42 = vld [vmem:[%s0 + $0xc8] sm:$0xff]
  %v43 = vld [vmem:[%s0 + $0xd0] sm:$0xff]
  %v44 = vld [vmem:[%s0 + $0xd8] sm:$0xff]
  %v45 = vld [vmem:[%s0 + $0xe0] sm:$0xff]
  %v46 = vld [vmem:[%s0 + $0xe8] sm:$0xff]
  %v47 = vld [vmem:[%s0 + $0xf0] sm:$0xff]
  %v48 = vld [vmem:[%s0 + $0xf8] sm:$0xff]
  %v49 = vld [vmem:[%s1] sm:$0x3]
  %v51 = vlaneseq
  %v52 = vshrl.u32 %v51, 7
  %v53 = vsub.s32 0, %v52
  %v54 = vrot.slane %v49, %v53
  %v55 = vlaneseq
  %v56 = vshrl.u32 %v55, 7
  %v57 = vsub.s32 1, %v56
  %v58 = vrot.slane %v49, %v57
  %v61 = vmul.f32 %v17, %v54
  %v62 = vmul.f32 %v18, %v58
  %v63 = vmul.f32 %v19, %v54
  %v64 = vmul.f32 %v20, %v58
  %v65 = vmul.f32 %v21, %v54
  %v66 = vmul.f32 %v22, %v58
  %v67 = vmul.f32 %v23, %v54
  %v68 = vmul.f32 %v24, %v58
  %v69 = vmul.f32 %v25, %v54
  %v70 = vmul.f32 %v26, %v58
  %v71 = vmul.f32 %v27, %v54
  %v72 = vmul.f32 %v28, %v58
  %v73 = vmul.f32 %v29, %v54
  %v74 = vmul.f32 %v30, %v58
  %v75 = vmul.f32 %v31, %v54
  %v76 = vmul.f32 %v32, %v58
  %v77 = vmul.f32 %v33, %v54
  %v78 = vmul.f32 %v34, %v58
  %v79 = vmul.f32 %v35, %v54
  %v80 = vmul.f32 %v36, %v58
  %v81 = vmul.f32 %v37, %v54
  %v82 = vmul.f32 %v38, %v58
  %v83 = vmul.f32 %v39, %v54
  %v84 = vmul.f32 %v40, %v58
  %v85 = vmul.f32 %v41, %v54
  %v86 = vmul.f32 %v42, %v58
  %v87 = vmul.f32 %v43, %v54
  %v88 = vmul.f32 %v44, %v58
  %v89 = vmul.f32 %v45, %v54
  %v90 = vmul.f32 %v46, %v58
  %v91 = vmul.f32 %v47, %v54
  %v92 = vmul.f32 %v48, %v58
  %v93 = vld [vmem:[%s2] sm:$0x3]
  %v95 = vlaneseq
  %v96 = vshrl.u32 %v95, 7
  %v97 = vsub.s32 0, %v96
  %v98 = vrot.slane %v93, %v97
  %v99 = vlaneseq
  %v100 = vshrl.u32 %v99, 7
  %v101 = vsub.s32 1, %v100
  %v102 = vrot.slane %v93, %v101
  %v105 = vadd.f32 %v61, %v98
  %v106 = vadd.f32 %v62, %v102
  %v107 = vadd.f32 %v63, %v98
  %v108 = vadd.f32 %v64, %v102
  %v109 = vadd.f32 %v65, %v98
  %v110 = vadd.f32 %v66, %v102
  %v111 = vadd.f32 %v67, %v98
  %v112 = vadd.f32 %v68, %v102
  %v113 = vadd.f32 %v69, %v98
  %v114 = vadd.f32 %v70, %v102
  %v115 = vadd.f32 %v71, %v98
  %v116 = vadd.f32 %v72, %v102
  %v117 = vadd.f32 %v73, %v98
  %v118 = vadd.f32 %v74, %v102
  %v119 = vadd.f32 %v75, %v98
  %v120 = vadd.f32 %v76, %v102
  %v121 = vadd.f32 %v77, %v98
  %v122 = vadd.f32 %v78, %v102
  %v123 = vadd.f32 %v79, %v98
  %v124 = vadd.f32 %v80, %v102
  %v125 = vadd.f32 %v81, %v98
  %v126 = vadd.f32 %v82, %v102
  %v127 = vadd.f32 %v83, %v98
  %v128 = vadd.f32 %v84, %v102
  %v129 = vadd.f32 %v85, %v98
  %v130 = vadd.f32 %v86, %v102
  %v131 = vadd.f32 %v87, %v98
  %v132 = vadd.f32 %v88, %v102
  %v133 = vadd.f32 %v89, %v98
  %v134 = vadd.f32 %v90, %v102
  %v135 = vadd.f32 %v91, %v98
  %v136 = vadd.f32 %v92, %v102
  %v137 = vld [vmem:[%s3] sm:$0x3]
  %vm138 = vcmp.gt.f32.partialorder %v137, 0.0
  %v139 = vmax.f32 %v105, 0.0
  %v140 = vmax.f32 %v106, 0.0
  %v141 = vmax.f32 %v107, 0.0
  %v142 = vmax.f32 %v108, 0.0
  %v143 = vmax.f32 %v109, 0.0
  %v144 = vmax.f32 %v110, 0.0
  %v145 = vmax.f32 %v111, 0.0
  %v146 = vmax.f32 %v112, 0.0
  %v147 = vmax.f32 %v113, 0.0
  %v148 = vmax.f32 %v114, 0.0
  %v149 = vmax.f32 %v115, 0.0
  %v150 = vmax.f32 %v116, 0.0
  %v151 = vmax.f32 %v117, 0.0
  %v152 = vmax.f32 %v118, 0.0
  %v153 = vmax.f32 %v119, 0.0
  %v154 = vmax.f32 %v120, 0.0
  %v155 = vmax.f32 %v121, 0.0
  %v156 = vmax.f32 %v122, 0.0
  %v157 = vmax.f32 %v123, 0.0
  %v158 = vmax.f32 %v124, 0.0
  %v159 = vmax.f32 %v125, 0.0
  %v160 = vmax.f32 %v126, 0.0
  %v161 = vmax.f32 %v127, 0.0
  %v162 = vmax.f32 %v128, 0.0
  %v163 = vmax.f32 %v129, 0.0
  %v164 = vmax.f32 %v130, 0.0
  %v165 = vmax.f32 %v131, 0.0
  %v166 = vmax.f32 %v132, 0.0
  %v167 = vmax.f32 %v133, 0.0
  %v168 = vmax.f32 %v134, 0.0
  %v169 = vmax.f32 %v135, 0.0
  %v170 = vmax.f32 %v136, 0.0
  %v171 = vsel %vm138, 1, 0
  %v172 = vlaneseq
  %v173 = vshrl.u32 %v172, 7
  %v174 = vsub.s32 0, %v173
  %v175 = vrot.slane %v171, %v174
  %v176 = vlaneseq
  %v177 = vshrl.u32 %v176, 7
  %v178 = vsub.s32 1, %v177
  %v179 = vrot.slane %v171, %v178
  %vm180 = vcmp.eq.s32.totalorder %v175, 1
  %vm181 = vcmp.eq.s32.totalorder %v179, 1
  %v182 = vsel %vm180, %v139, %v105
  %v183 = vsel %vm181, %v140, %v106
  %v184 = vsel %vm180, %v141, %v107
  %v185 = vsel %vm181, %v142, %v108
  %v186 = vsel %vm180, %v143, %v109
  %v187 = vsel %vm181, %v144, %v110
  %v188 = vsel %vm180, %v145, %v111
  %v189 = vsel %vm181, %v146, %v112
  %v190 = vsel %vm180, %v147, %v113
  %v191 = vsel %vm181, %v148, %v114
  %v192 = vsel %vm180, %v149, %v115
  %v193 = vsel %vm181, %v150, %v116
  %v194 = vsel %vm180, %v151, %v117
  %v195 = vsel %vm181, %v152, %v118
  %v196 = vsel %vm180, %v153, %v119
  %v197 = vsel %vm181, %v154, %v120
  %v198 = vsel %vm180, %v155, %v121
  %v199 = vsel %vm181, %v156, %v122
  %v200 = vsel %vm180, %v157, %v123
  %v201 = vsel %vm181, %v158, %v124
  %v202 = vsel %vm180, %v159, %v125
  %v203 = vsel %vm181, %v160, %v126
  %v204 = vsel %vm180, %v161, %v127
  %v205 = vsel %vm181, %v162, %v128
  %v206 = vsel %vm180, %v163, %v129
  %v207 = vsel %vm181, %v164, %v130
  %v208 = vsel %vm180, %v165, %v131
  %v209 = vsel %vm181, %v166, %v132
  %v210 = vsel %vm180, %v167, %v133
  %v211 = vsel %vm181, %v168, %v134
  %v212 = vsel %vm180, %v169, %v135
  %v213 = vsel %vm181, %v170, %v136
  %214 = vst [vmem:[%s4] sm:$0xff] %v182
  %215 = vst [vmem:[%s4 + $0x8] sm:$0xff] %v183
  %216 = vst [vmem:[%s4 + $0x10] sm:$0xff] %v184
  %217 = vst [vmem:[%s4 + $0x18] sm:$0xff] %v185
  %218 = vst [vmem:[%s4 + $0x20] sm:$0xff] %v186
  %219 = vst [vmem:[%s4 + $0x28] sm:$0xff] %v187
  %220 = vst [vmem:[%s4 + $0x30] sm:$0xff] %v188
  %221 = vst [vmem:[%s4 + $0x38] sm:$0xff] %v189
  %222 = vst [vmem:[%s4 + $0x40] sm:$0xff] %v190
  %223 = vst [vmem:[%s4 + $0x48] sm:$0xff] %v191
  %224 = vst [vmem:[%s4 + $0x50] sm:$0xff] %v192
  %225 = vst [vmem:[%s4 + $0x58] sm:$0xff] %v193
  %226 = vst [vmem:[%s4 + $0x60] sm:$0xff] %v194
  %227 = vst [vmem:[%s4 + $0x68] sm:$0xff] %v195
  %228 = vst [vmem:[%s4 + $0x70] sm:$0xff] %v196
  %229 = vst [vmem:[%s4 + $0x78] sm:$0xff] %v197
  %230 = vst [vmem:[%s4 + $0x80] sm:$0xff] %v198
  %231 = vst [vmem:[%s4 + $0x88] sm:$0xff] %v199
  %232 = vst [vmem:[%s4 + $0x90] sm:$0xff] %v200
  %233 = vst [vmem:[%s4 + $0x98] sm:$0xff] %v201
  %234 = vst [vmem:[%s4 + $0xa0] sm:$0xff] %v202
  %235 = vst [vmem:[%s4 + $0xa8] sm:$0xff] %v203
  %236 = vst [vmem:[%s4 + $0xb0] sm:$0xff] %v204
  %237 = vst [vmem:[%s4 + $0xb8] sm:$0xff] %v205
  %238 = vst [vmem:[%s4 + $0xc0] sm:$0xff] %v206
  %239 = vst [vmem:[%s4 + $0xc8] sm:$0xff] %v207
  %240 = vst [vmem:[%s4 + $0xd0] sm:$0xff] %v208
  %241 = vst [vmem:[%s4 + $0xd8] sm:$0xff] %v209
  %242 = vst [vmem:[%s4 + $0xe0] sm:$0xff] %v210
  %243 = vst [vmem:[%s4 + $0xe8] sm:$0xff] %v211
  %244 = vst [vmem:[%s4 + $0xf0] sm:$0xff] %v212
  %245 = vst [vmem:[%s4 + $0xf8] sm:$0xff] %v213
  // Predicated region
  $region18: #{basicblock_forward.5} parent=0 // pred_check
    _
  $region19: #{basicblock_forward.5} parent=0 // pred_check_branch
    %247 = sbr.rel (0) target = $region21
  $region20: #{basicblock_forward.5} parent=0 // pred_region
    _
  $region21: #{basicblock_forward.5} parent=0 // pred_fallthru
    _
  // Predicated region
  $region22: #{basicblock_forward.5} parent=0 // pred_check
    _
  $region23: #{basicblock_forward.5} parent=0 // pred_check_branch
    %249 = sbr.rel (0) target = $region25
  $region24: #{basicblock_forward.5} parent=0 // pred_region
    _
  $region25: #{basicblock_forward.5} parent=0 // pred_fallthru
    _

// kernel: basicblock_forward.4
$region0: #{basicblock_forward.4}
  #allocation0 [shape = 'u32[]', space=smem, size = 0x4, offset = 0x4, fixed_abs, tag = 'smem constant byte address 0x4 - core index']
  #allocation1 [shape = 'u32[144,128]{1,0:T(1,128)}', space=vmem, size = 0x12000, scoped, tag = 'internal scratch']
  #allocation2 [shape = 'f32[128,256]{1,0:T(8,128)}', space=vmem, size = 0x20000, scoped, tag = 'scratch operand']
  %s0 = inlined_call_operand.vmem [shape: bf16[128,128], index: 0, kind: input, shape index: {}]
  %s1 = inlined_call_operand.vmem [shape: bf16[128,256], index: 1, kind: input, shape index: {}]
  %s2 = inlined_call_operand.vmem [shape: f32[1,256], index: 2, kind: input, shape index: {}]
  %s3 = inlined_call_operand.vmem [shape: f32[128,256], index: 3, kind: output, shape index: {0}]
  %s4 = inlined_call_operand.vmem [shape: f32[8,256], index: 4, kind: output, shape index: {1}]
  %5 = xla_tuple %s3, %s4
  %s6 = sld [smem:[#allocation0]]
  $region38: #{basicblock_forward.4} parent=0
    _
  %s8 = ssub.s32 1, %s6
  %s9 = scalar_select 0, %s8, %s6
  // Predicated region
  $region2: #{basicblock_forward.4} parent=0 // pred_check
    _
  $region3: #{basicblock_forward.4} parent=0 // pred_check_branch
    %11 = sbr.rel (0) target = $region5
  $region4: #{basicblock_forward.4} parent=0 // pred_region
    _
  $region5: #{basicblock_forward.4} parent=0 // pred_fallthru
    _
  // Predicated region
  $region6: #{basicblock_forward.4} parent=0 // pred_check
    _
  $region7: #{basicblock_forward.4} parent=0 // pred_check_branch
    %13 = sbr.rel (0) target = $region9
  $region8: #{basicblock_forward.4} parent=0 // pred_region
    _
  $region9: #{basicblock_forward.4} parent=0 // pred_fallthru
    _
  // Predicated region
  $region10: #{basicblock_forward.4} parent=0 // pred_check
    _
  $region11: #{basicblock_forward.4} parent=0 // pred_check_branch
    %15 = sbr.rel (0) target = $region13
  $region12: #{basicblock_forward.4} parent=0 // pred_region
    _
  $region13: #{basicblock_forward.4} parent=0 // pred_fallthru
    _
  %p17 = scmp.eq.s32.totalorder 0, 0
  // Predicated region
  $region14: #{basicblock_forward.4} parent=0 // pred_check
    %p18 = pneg %p17
  $region15: #{basicblock_forward.4} parent=0 // pred_check_branch
    %20 = sbr.rel (%p18) target = $region17
  $region16: #{basicblock_forward.4} parent=0 // pred_region
    %21 = vst [vmem:[#allocation2] sm:$0xff] 0.0
    %22 = vst [vmem:[#allocation2 + $0x8] sm:$0xff] 0.0
    %23 = vst [vmem:[#allocation2 + $0x10] sm:$0xff] 0.0
    %24 = vst [vmem:[#allocation2 + $0x18] sm:$0xff] 0.0
    %25 = vst [vmem:[#allocation2 + $0x20] sm:$0xff] 0.0
    %26 = vst [vmem:[#allocation2 + $0x28] sm:$0xff] 0.0
    %27 = vst [vmem:[#allocation2 + $0x30] sm:$0xff] 0.0
    %28 = vst [vmem:[#allocation2 + $0x38] sm:$0xff] 0.0
    %29 = vst [vmem:[#allocation2 + $0x40] sm:$0xff] 0.0
    %30 = vst [vmem:[#allocation2 + $0x48] sm:$0xff] 0.0
    %31 = vst [vmem:[#allocation2 + $0x50] sm:$0xff] 0.0
    %32 = vst [vmem:[#allocation2 + $0x58] sm:$0xff] 0.0
    %33 = vst [vmem:[#allocation2 + $0x60] sm:$0xff] 0.0
    %34 = vst [vmem:[#allocation2 + $0x68] sm:$0xff] 0.0
    %35 = vst [vmem:[#allocation2 + $0x70] sm:$0xff] 0.0
    %36 = vst [vmem:[#allocation2 + $0x78] sm:$0xff] 0.0
    %37 = vst [vmem:[#allocation2 + $0x80] sm:$0xff] 0.0
    %38 = vst [vmem:[#allocation2 + $0x88] sm:$0xff] 0.0
    %39 = vst [vmem:[#allocation2 + $0x90] sm:$0xff] 0.0
    %40 = vst [vmem:[#allocation2 + $0x98] sm:$0xff] 0.0
    %41 = vst [vmem:[#allocation2 + $0xa0] sm:$0xff] 0.0
    %42 = vst [vmem:[#allocation2 + $0xa8] sm:$0xff] 0.0
    %43 = vst [vmem:[#allocation2 + $0xb0] sm:$0xff] 0.0
    %44 = vst [vmem:[#allocation2 + $0xb8] sm:$0xff] 0.0
    %45 = vst [vmem:[#allocation2 + $0xc0] sm:$0xff] 0.0
    %46 = vst [vmem:[#allocation2 + $0xc8] sm:$0xff] 0.0
    %47 = vst [vmem:[#allocation2 + $0xd0] sm:$0xff] 0.0
    %48 = vst [vmem:[#allocation2 + $0xd8] sm:$0xff] 0.0
    %49 = vst [vmem:[#allocation2 + $0xe0] sm:$0xff] 0.0
    %50 = vst [vmem:[#allocation2 + $0xe8] sm:$0xff] 0.0
    %51 = vst [vmem:[#allocation2 + $0xf0] sm:$0xff] 0.0
    %52 = vst [vmem:[#allocation2 + $0xf8] sm:$0xff] 0.0
  $region17: #{basicblock_forward.4} parent=0 // pred_fallthru
    _
  %v53 = vld [vmem:[#allocation2] sm:$0xff]
  %v54 = vld [vmem:[#allocation2 + $0x8] sm:$0xff]
  %v55 = vld [vmem:[#allocation2 + $0x10] sm:$0xff]
  %v56 = vld [vmem:[#allocation2 + $0x18] sm:$0xff]
  %v57 = vld [vmem:[#allocation2 + $0x20] sm:$0xff]
  %v58 = vld [vmem:[#allocation2 + $0x28] sm:$0xff]
  %v59 = vld [vmem:[#allocation2 + $0x30] sm:$0xff]
  %v60 = vld [vmem:[#allocation2 + $0x38] sm:$0xff]
  %v61 = vld [vmem:[#allocation2 + $0x40] sm:$0xff]
  %v62 = vld [vmem:[#allocation2 + $0x48] sm:$0xff]
  %v63 = vld [vmem:[#allocation2 + $0x50] sm:$0xff]
  %v64 = vld [vmem:[#allocation2 + $0x58] sm:$0xff]
  %v65 = vld [vmem:[#allocation2 + $0x60] sm:$0xff]
  %v66 = vld [vmem:[#allocation2 + $0x68] sm:$0xff]
  %v67 = vld [vmem:[#allocation2 + $0x70] sm:$0xff]
  %v68 = vld [vmem:[#allocation2 + $0x78] sm:$0xff]
  %v69 = vld [vmem:[#allocation2 + $0x80] sm:$0xff]
  %v70 = vld [vmem:[#allocation2 + $0x88] sm:$0xff]
  %v71 = vld [vmem:[#allocation2 + $0x90] sm:$0xff]
  %v72 = vld [vmem:[#allocation2 + $0x98] sm:$0xff]
  %v73 = vld [vmem:[#allocation2 + $0xa0] sm:$0xff]
  %v74 = vld [vmem:[#allocation2 + $0xa8] sm:$0xff]
  %v75 = vld [vmem:[#allocation2 + $0xb0] sm:$0xff]
  %v76 = vld [vmem:[#allocation2 + $0xb8] sm:$0xff]
  %v77 = vld [vmem:[#allocation2 + $0xc0] sm:$0xff]
  %v78 = vld [vmem:[#allocation2 + $0xc8] sm:$0xff]
  %v79 = vld [vmem:[#allocation2 + $0xd0] sm:$0xff]
  %v80 = vld [vmem:[#allocation2 + $0xd8] sm:$0xff]
  %v81 = vld [vmem:[#allocation2 + $0xe0] sm:$0xff]
  %v82 = vld [vmem:[#allocation2 + $0xe8] sm:$0xff]
  %v83 = vld [vmem:[#allocation2 + $0xf0] sm:$0xff]
  %v84 = vld [vmem:[#allocation2 + $0xf8] sm:$0xff]
  %v85 = vld [vmem:[%s0] sm:$0xf]
  %v86 = vld [vmem:[%s0 + $0x4] sm:$0xf]
  %v87 = vld [vmem:[%s0 + $0x8] sm:$0xf]
  %v88 = vld [vmem:[%s0 + $0xc] sm:$0xf]
  %v89 = vld [vmem:[%s0 + $0x10] sm:$0xf]
  %v90 = vld [vmem:[%s0 + $0x14] sm:$0xf]
  %v91 = vld [vmem:[%s0 + $0x18] sm:$0xf]
  %v92 = vld [vmem:[%s0 + $0x1c] sm:$0xf]
  %v93 = vld [vmem:[%s0 + $0x20] sm:$0xf]
  %v94 = vld [vmem:[%s0 + $0x24] sm:$0xf]
  %v95 = vld [vmem:[%s0 + $0x28] sm:$0xf]
  %v96 = vld [vmem:[%s0 + $0x2c] sm:$0xf]
  %v97 = vld [vmem:[%s0 + $0x30] sm:$0xf]
  %v98 = vld [vmem:[%s0 + $0x34] sm:$0xf]
  %v99 = vld [vmem:[%s0 + $0x38] sm:$0xf]
  %v100 = vld [vmem:[%s0 + $0x3c] sm:$0xf]
  %v101 = vld [vmem:[%s1] sm:$0xff]
  %v102 = vld [vmem:[%s1 + $0x8] sm:$0xff]
  %v103 = vld [vmem:[%s1 + $0x10] sm:$0xff]
  %v104 = vld [vmem:[%s1 + $0x18] sm:$0xff]
  %v105 = vld [vmem:[%s1 + $0x20] sm:$0xff]
  %v106 = vld [vmem:[%s1 + $0x28] sm:$0xff]
  %v107 = vld [vmem:[%s1 + $0x30] sm:$0xff]
  %v108 = vld [vmem:[%s1 + $0x38] sm:$0xff]
  %v109 = vld [vmem:[%s1 + $0x40] sm:$0xff]
  %v110 = vld [vmem:[%s1 + $0x48] sm:$0xff]
  %v111 = vld [vmem:[%s1 + $0x50] sm:$0xff]
  %v112 = vld [vmem:[%s1 + $0x58] sm:$0xff]
  %v113 = vld [vmem:[%s1 + $0x60] sm:$0xff]
  %v114 = vld [vmem:[%s1 + $0x68] sm:$0xff]
  %v115 = vld [vmem:[%s1 + $0x70] sm:$0xff]
  %v116 = vld [vmem:[%s1 + $0x78] sm:$0xff]
  %v133 = vunpack.c.l.b16 %v85
  %v134 = vunpack.c.l.b16 %v86
  %v135 = vunpack.c.l.b16 %v87
  %v136 = vunpack.c.l.b16 %v88
  %v137 = vunpack.c.l.b16 %v89
  %v138 = vunpack.c.l.b16 %v90
  %v139 = vunpack.c.l.b16 %v91
  %v140 = vunpack.c.l.b16 %v92
  %v141 = vunpack.c.l.b16 %v93
  %v142 = vunpack.c.l.b16 %v94
  %v143 = vunpack.c.l.b16 %v95
  %v144 = vunpack.c.l.b16 %v96
  %v145 = vunpack.c.l.b16 %v97
  %v146 = vunpack.c.l.b16 %v98
  %v147 = vunpack.c.l.b16 %v99
  %v148 = vunpack.c.l.b16 %v100
  %v149 = vpack.c.b16 %v134, %v133
  %v150 = vpack.c.b16 %v136, %v135
  %v151 = vpack.c.b16 %v138, %v137
  %v152 = vpack.c.b16 %v140, %v139
  %v153 = vpack.c.b16 %v142, %v141
  %v154 = vpack.c.b16 %v144, %v143
  %v155 = vpack.c.b16 %v146, %v145
  %v156 = vpack.c.b16 %v148, %v147
  %v181 = vunpack.c.l.b16 %v101
  %v182 = vunpack.c.h.b16 %v101
  %v183 = vunpack.c.l.b16 %v102
  %v184 = vunpack.c.h.b16 %v102
  %v185 = vunpack.c.l.b16 %v103
  %v186 = vunpack.c.h.b16 %v103
  %v187 = vunpack.c.l.b16 %v104
  %v188 = vunpack.c.h.b16 %v104
  %v189 = vunpack.c.l.b16 %v105
  %v190 = vunpack.c.h.b16 %v105
  %v191 = vunpack.c.l.b16 %v106
  %v192 = vunpack.c.h.b16 %v106
  %v193 = vunpack.c.l.b16 %v107
  %v194 = vunpack.c.h.b16 %v107
  %v195 = vunpack.c.l.b16 %v108
  %v196 = vunpack.c.h.b16 %v108
  %v197 = vunpack.c.l.b16 %v109
  %v198 = vunpack.c.h.b16 %v109
  %v199 = vunpack.c.l.b16 %v110
  %v200 = vunpack.c.h.b16 %v110
  %v201 = vunpack.c.l.b16 %v111
  %v202 = vunpack.c.h.b16 %v111
  %v203 = vunpack.c.l.b16 %v112
  %v204 = vunpack.c.h.b16 %v112
  %v205 = vunpack.c.l.b16 %v113
  %v206 = vunpack.c.h.b16 %v113
  %v207 = vunpack.c.l.b16 %v114
  %v208 = vunpack.c.h.b16 %v114
  %v209 = vunpack.c.l.b16 %v115
  %v210 = vunpack.c.h.b16 %v115
  %v211 = vunpack.c.l.b16 %v116
  %v212 = vunpack.c.h.b16 %v116
  %v213 = vpack.c.b16 %v183, %v181
  %v214 = vpack.c.b16 %v184, %v182
  %v215 = vpack.c.b16 %v187, %v185
  %v216 = vpack.c.b16 %v188, %v186
  %v217 = vpack.c.b16 %v191, %v189
  %v218 = vpack.c.b16 %v192, %v190
  %v219 = vpack.c.b16 %v195, %v193
  %v220 = vpack.c.b16 %v196, %v194
  %v221 = vpack.c.b16 %v199, %v197
  %v222 = vpack.c.b16 %v200, %v198
  %v223 = vpack.c.b16 %v203, %v201
  %v224 = vpack.c.b16 %v204, %v202
  %v225 = vpack.c.b16 %v207, %v205
  %v226 = vpack.c.b16 %v208, %v206
  %v227 = vpack.c.b16 %v211, %v209
  %v228 = vpack.c.b16 %v212, %v210
  %245 = vmatprep.subr.bf16.mxu0 %v228
  %246 = vmatpush1.bf16.msra.mxu0 %v227
  %247 = vmatprep.subr.bf16.mxu0 %v226
  %248 = vmatpush1.bf16.msra.mxu0 %v225
  %249 = vmatprep.subr.bf16.mxu0 %v224
  %250 = vmatpush1.bf16.msra.mxu0 %v223
  %251 = vmatprep.subr.bf16.mxu0 %v222
  %252 = vmatpush1.bf16.msra.mxu0 %v221
  %253 = vmatprep.subr.bf16.mxu0 %v220
  %254 = vmatpush1.bf16.msra.mxu0 %v219
  %255 = vmatprep.subr.bf16.mxu0 %v218
  %256 = vmatpush1.bf16.msra.mxu0 %v217
  %257 = vmatprep.subr.bf16.mxu0 %v216
  %258 = vmatpush1.bf16.msra.mxu0 %v215
  %259 = vmatprep.subr.bf16.mxu0 %v214
  %260 = vmatpush1.bf16.msra.mxu0 %v213
  %261 = vmatprep.subr.bf16.mxu0 0
  %262 = vmatpush2.bf16.msra.mxu0 0
  %263 = vmatprep.subr.bf16.mxu0 0
  %264 = vmatpush2.bf16.msra.mxu0 0
  %265 = vmatprep.subr.bf16.mxu0 0
  %266 = vmatpush2.bf16.msra.mxu0 0
  %267 = vmatprep.subr.bf16.mxu0 0
  %268 = vmatpush2.bf16.msra.mxu0 0
  %269 = vmatprep.subr.bf16.mxu0 0
  %270 = vmatpush2.bf16.msra.mxu0 0
  %271 = vmatprep.subr.bf16.mxu0 0
  %272 = vmatpush2.bf16.msra.mxu0 0
  %273 = vmatprep.subr.bf16.mxu0 0
  %274 = vmatpush2.bf16.msra.mxu0 0
  %275 = vmatprep.subr.bf16.mxu0 0
  %276 = vmatpush2.bf16.msra.mxu0 0
  %277 = vmatprep.mubr.bf16.mxu0 0
  %278 = vmatmul.mubr.bf16.gmra.mxu0 %v149
  %v279 = vpop.f32.mrf.mxu0
  %v280 = vadd.f32 0.0, %v279
  %v281 = vpop.f32.mrf.mxu0
  %v282 = vadd.f32 0.0, %v281
  %v283 = vpop.f32.mrf.mxu0
  %v284 = vadd.f32 0.0, %v283
  %v285 = vpop.f32.mrf.mxu0
  %v286 = vadd.f32 0.0, %v285
  %287 = vmatprep.mubr.bf16.mxu0 0
  %288 = vmatmul.mubr.bf16.gmra.mxu0 %v150
  %v289 = vpop.f32.mrf.mxu0
  %v290 = vadd.f32 0.0, %v289
  %v291 = vpop.f32.mrf.mxu0
  %v292 = vadd.f32 0.0, %v291
  %v293 = vpop.f32.mrf.mxu0
  %v294 = vadd.f32 0.0, %v293
  %v295 = vpop.f32.mrf.mxu0
  %v296 = vadd.f32 0.0, %v295
  %297 = vmatprep.mubr.bf16.mxu0 0
  %298 = vmatmul.mubr.bf16.gmra.mxu0 %v151
  %v299 = vpop.f32.mrf.mxu0
  %v300 = vadd.f32 0.0, %v299
  %v301 = vpop.f32.mrf.mxu0
  %v302 = vadd.f32 0.0, %v301
  %v303 = vpop.f32.mrf.mxu0
  %v304 = vadd.f32 0.0, %v303
  %v305 = vpop.f32.mrf.mxu0
  %v306 = vadd.f32 0.0, %v305
  %307 = vmatprep.mubr.bf16.mxu0 0
  %308 = vmatmul.mubr.bf16.gmra.mxu0 %v152
  %v309 = vpop.f32.mrf.mxu0
  %v310 = vadd.f32 0.0, %v309
  %v311 = vpop.f32.mrf.mxu0
  %v312 = vadd.f32 0.0, %v311
  %v313 = vpop.f32.mrf.mxu0
  %v314 = vadd.f32 0.0, %v313
  %v315 = vpop.f32.mrf.mxu0
  %v316 = vadd.f32 0.0, %v315
  %317 = vmatprep.mubr.bf16.mxu0 0
  %318 = vmatmul.mubr.bf16.gmra.mxu0 %v153
  %v319 = vpop.f32.mrf.mxu0
  %v320 = vadd.f32 0.0, %v319
  %v321 = vpop.f32.mrf.mxu0
  %v322 = vadd.f32 0.0, %v321
  %v323 = vpop.f32.mrf.mxu0
  %v324 = vadd.f32 0.0, %v323
  %v325 = vpop.f32.mrf.mxu0
  %v326 = vadd.f32 0.0, %v325
  %327 = vmatprep.mubr.bf16.mxu0 0
  %328 = vmatmul.mubr.bf16.gmra.mxu0 %v154
  %v329 = vpop.f32.mrf.mxu0
  %v330 = vadd.f32 0.0, %v329
  %v331 = vpop.f32.mrf.mxu0
  %v332 = vadd.f32 0.0, %v331
  %v333 = vpop.f32.mrf.mxu0
  %v334 = vadd.f32 0.0, %v333
  %v335 = vpop.f32.mrf.mxu0
  %v336 = vadd.f32 0.0, %v335
  %337 = vmatprep.mubr.bf16.mxu0 0
  %338 = vmatmul.mubr.bf16.gmra.mxu0 %v155
  %v339 = vpop.f32.mrf.mxu0
  %v340 = vadd.f32 0.0, %v339
  %v341 = vpop.f32.mrf.mxu0
  %v342 = vadd.f32 0.0, %v341
  %v343 = vpop.f32.mrf.mxu0
  %v344 = vadd.f32 0.0, %v343
  %v345 = vpop.f32.mrf.mxu0
  %v346 = vadd.f32 0.0, %v345
  %347 = vmatprep.mubr.bf16.mxu0 0
  %348 = vmatmul.mubr.bf16.gmra.mxu0 %v156
  %v349 = vpop.f32.mrf.mxu0
  %v350 = vadd.f32 0.0, %v349
  %v351 = vpop.f32.mrf.mxu0
  %v352 = vadd.f32 0.0, %v351
  %v353 = vpop.f32.mrf.mxu0
  %v354 = vadd.f32 0.0, %v353
  %v355 = vpop.f32.mrf.mxu0
  %v356 = vadd.f32 0.0, %v355
  %357 = vdwg.mxu0
  %v358 = vadd.f32 %v53, %v280
  %v359 = vadd.f32 %v54, %v282
  %v360 = vadd.f32 %v55, %v284
  %v361 = vadd.f32 %v56, %v286
  %v362 = vadd.f32 %v57, %v290
  %v363 = vadd.f32 %v58, %v292
  %v364 = vadd.f32 %v59, %v294
  %v365 = vadd.f32 %v60, %v296
  %v366 = vadd.f32 %v61, %v300
  %v367 = vadd.f32 %v62, %v302
  %v368 = vadd.f32 %v63, %v304
  %v369 = vadd.f32 %v64, %v306
  %v370 = vadd.f32 %v65, %v310
  %v371 = vadd.f32 %v66, %v312
  %v372 = vadd.f32 %v67, %v314
  %v373 = vadd.f32 %v68, %v316
  %v374 = vadd.f32 %v69, %v320
  %v375 = vadd.f32 %v70, %v322
  %v376 = vadd.f32 %v71, %v324
  %v377 = vadd.f32 %v72, %v326
  %v378 = vadd.f32 %v73, %v330
  %v379 = vadd.f32 %v74, %v332
  %v380 = vadd.f32 %v75, %v334
  %v381 = vadd.f32 %v76, %v336
  %v382 = vadd.f32 %v77, %v340
  %v383 = vadd.f32 %v78, %v342
  %v384 = vadd.f32 %v79, %v344
  %v385 = vadd.f32 %v80, %v346
  %v386 = vadd.f32 %v81, %v350
  %v387 = vadd.f32 %v82, %v352
  %v388 = vadd.f32 %v83, %v354
  %v389 = vadd.f32 %v84, %v356
  %390 = vst [vmem:[#allocation2] sm:$0xff] %v358
  %391 = vst [vmem:[#allocation2 + $0x8] sm:$0xff] %v359
  %392 = vst [vmem:[#allocation2 + $0x10] sm:$0xff] %v360
  %393 = vst [vmem:[#allocation2 + $0x18] sm:$0xff] %v361
  %394 = vst [vmem:[#allocation2 + $0x20] sm:$0xff] %v362
  %395 = vst [vmem:[#allocation2 + $0x28] sm:$0xff] %v363
  %396 = vst [vmem:[#allocation2 + $0x30] sm:$0xff] %v364
  %397 = vst [vmem:[#allocation2 + $0x38] sm:$0xff] %v365
  %398 = vst [vmem:[#allocation2 + $0x40] sm:$0xff] %v366
  %399 = vst [vmem:[#allocation2 + $0x48] sm:$0xff] %v367
  %400 = vst [vmem:[#allocation2 + $0x50] sm:$0xff] %v368
  %401 = vst [vmem:[#allocation2 + $0x58] sm:$0xff] %v369
  %402 = vst [vmem:[#allocation2 + $0x60] sm:$0xff] %v370
  %403 = vst [vmem:[#allocation2 + $0x68] sm:$0xff] %v371
  %404 = vst [vmem:[#allocation2 + $0x70] sm:$0xff] %v372
  %405 = vst [vmem:[#allocation2 + $0x78] sm:$0xff] %v373
  %406 = vst [vmem:[#allocation2 + $0x80] sm:$0xff] %v374
  %407 = vst [vmem:[#allocation2 + $0x88] sm:$0xff] %v375
  %408 = vst [vmem:[#allocation2 + $0x90] sm:$0xff] %v376
  %409 = vst [vmem:[#allocation2 + $0x98] sm:$0xff] %v377
  %410 = vst [vmem:[#allocation2 + $0xa0] sm:$0xff] %v378
  %411 = vst [vmem:[#allocation2 + $0xa8] sm:$0xff] %v379
  %412 = vst [vmem:[#allocation2 + $0xb0] sm:$0xff] %v380
  %413 = vst [vmem:[#allocation2 + $0xb8] sm:$0xff] %v381
  %414 = vst [vmem:[#allocation2 + $0xc0] sm:$0xff] %v382
  %415 = vst [vmem:[#allocation2 + $0xc8] sm:$0xff] %v383
  %416 = vst [vmem:[#allocation2 + $0xd0] sm:$0xff] %v384
  %417 = vst [vmem:[#allocation2 + $0xd8] sm:$0xff] %v385
  %418 = vst [vmem:[#allocation2 + $0xe0] sm:$0xff] %v386
  %419 = vst [vmem:[#allocation2 + $0xe8] sm:$0xff] %v387
  %420 = vst [vmem:[#allocation2 + $0xf0] sm:$0xff] %v388
  %421 = vst [vmem:[#allocation2 + $0xf8] sm:$0xff] %v389
  // Predicated region
  $region18: #{basicblock_forward.4} parent=0 // pred_check
    %p422 = pneg %p17
  $region19: #{basicblock_forward.4} parent=0 // pred_check_branch
    %424 = sbr.rel (%p422) target = $region21
  $region20: #{basicblock_forward.4} parent=0 // pred_region
    %v425 = vld [vmem:[#allocation2] sm:$0xff]
    %v426 = vld [vmem:[#allocation2 + $0x8] sm:$0xff]
    %v427 = vld [vmem:[#allocation2 + $0x10] sm:$0xff]
    %v428 = vld [vmem:[#allocation2 + $0x18] sm:$0xff]
    %v429 = vld [vmem:[#allocation2 + $0x20] sm:$0xff]
    %v430 = vld [vmem:[#allocation2 + $0x28] sm:$0xff]
    %v431 = vld [vmem:[#allocation2 + $0x30] sm:$0xff]
    %v432 = vld [vmem:[#allocation2 + $0x38] sm:$0xff]
    %v433 = vld [vmem:[#allocation2 + $0x40] sm:$0xff]
    %v434 = vld [vmem:[#allocation2 + $0x48] sm:$0xff]
    %v435 = vld [vmem:[#allocation2 + $0x50] sm:$0xff]
    %v436 = vld [vmem:[#allocation2 + $0x58] sm:$0xff]
    %v437 = vld [vmem:[#allocation2 + $0x60] sm:$0xff]
    %v438 = vld [vmem:[#allocation2 + $0x68] sm:$0xff]
    %v439 = vld [vmem:[#allocation2 + $0x70] sm:$0xff]
    %v440 = vld [vmem:[#allocation2 + $0x78] sm:$0xff]
    %v441 = vld [vmem:[#allocation2 + $0x80] sm:$0xff]
    %v442 = vld [vmem:[#allocation2 + $0x88] sm:$0xff]
    %v443 = vld [vmem:[#allocation2 + $0x90] sm:$0xff]
    %v444 = vld [vmem:[#allocation2 + $0x98] sm:$0xff]
    %v445 = vld [vmem:[#allocation2 + $0xa0] sm:$0xff]
    %v446 = vld [vmem:[#allocation2 + $0xa8] sm:$0xff]
    %v447 = vld [vmem:[#allocation2 + $0xb0] sm:$0xff]
    %v448 = vld [vmem:[#allocation2 + $0xb8] sm:$0xff]
    %v449 = vld [vmem:[#allocation2 + $0xc0] sm:$0xff]
    %v450 = vld [vmem:[#allocation2 + $0xc8] sm:$0xff]
    %v451 = vld [vmem:[#allocation2 + $0xd0] sm:$0xff]
    %v452 = vld [vmem:[#allocation2 + $0xd8] sm:$0xff]
    %v453 = vld [vmem:[#allocation2 + $0xe0] sm:$0xff]
    %v454 = vld [vmem:[#allocation2 + $0xe8] sm:$0xff]
    %v455 = vld [vmem:[#allocation2 + $0xf0] sm:$0xff]
    %v456 = vld [vmem:[#allocation2 + $0xf8] sm:$0xff]
    %v457 = vld [vmem:[%s2] sm:$0x3]
    %v459 = vlaneseq
    %v460 = vshrl.u32 %v459, 7
    %v461 = vsub.s32 0, %v460
    %v462 = vrot.slane %v457, %v461
    %v463 = vlaneseq
    %v464 = vshrl.u32 %v463, 7
    %v465 = vsub.s32 1, %v464
    %v466 = vrot.slane %v457, %v465
    %v469 = vadd.f32 %v425, %v462
    %v470 = vadd.f32 %v426, %v466
    %v471 = vadd.f32 %v427, %v462
    %v472 = vadd.f32 %v428, %v466
    %v473 = vadd.f32 %v429, %v462
    %v474 = vadd.f32 %v430, %v466
    %v475 = vadd.f32 %v431, %v462
    %v476 = vadd.f32 %v432, %v466
    %v477 = vadd.f32 %v433, %v462
    %v478 = vadd.f32 %v434, %v466
    %v479 = vadd.f32 %v435, %v462
    %v480 = vadd.f32 %v436, %v466
    %v481 = vadd.f32 %v437, %v462
    %v482 = vadd.f32 %v438, %v466
    %v483 = vadd.f32 %v439, %v462
    %v484 = vadd.f32 %v440, %v466
    %v485 = vadd.f32 %v441, %v462
    %v486 = vadd.f32 %v442, %v466
    %v487 = vadd.f32 %v443, %v462
    %v488 = vadd.f32 %v444, %v466
    %v489 = vadd.f32 %v445, %v462
    %v490 = vadd.f32 %v446, %v466
    %v491 = vadd.f32 %v447, %v462
    %v492 = vadd.f32 %v448, %v466
    %v493 = vadd.f32 %v449, %v462
    %v494 = vadd.f32 %v450, %v466
    %v495 = vadd.f32 %v451, %v462
    %v496 = vadd.f32 %v452, %v466
    %v497 = vadd.f32 %v453, %v462
    %v498 = vadd.f32 %v454, %v466
    %v499 = vadd.f32 %v455, %v462
    %v500 = vadd.f32 %v456, %v466
    %501 = vst [vmem:[%s3] sm:$0xff] %v469
    %502 = vst [vmem:[%s3 + $0x8] sm:$0xff] %v470
    %503 = vst [vmem:[%s3 + $0x10] sm:$0xff] %v471
    %504 = vst [vmem:[%s3 + $0x18] sm:$0xff] %v472
    %505 = vst [vmem:[%s3 + $0x20] sm:$0xff] %v473
    %506 = vst [vmem:[%s3 + $0x28] sm:$0xff] %v474
    %507 = vst [vmem:[%s3 + $0x30] sm:$0xff] %v475
    %508 = vst [vmem:[%s3 + $0x38] sm:$0xff] %v476
    %509 = vst [vmem:[%s3 + $0x40] sm:$0xff] %v477
    %510 = vst [vmem:[%s3 + $0x48] sm:$0xff] %v478
    %511 = vst [vmem:[%s3 + $0x50] sm:$0xff] %v479
    %512 = vst [vmem:[%s3 + $0x58] sm:$0xff] %v480
    %513 = vst [vmem:[%s3 + $0x60] sm:$0xff] %v481
    %514 = vst [vmem:[%s3 + $0x68] sm:$0xff] %v482
    %515 = vst [vmem:[%s3 + $0x70] sm:$0xff] %v483
    %516 = vst [vmem:[%s3 + $0x78] sm:$0xff] %v484
    %517 = vst [vmem:[%s3 + $0x80] sm:$0xff] %v485
    %518 = vst [vmem:[%s3 + $0x88] sm:$0xff] %v486
    %519 = vst [vmem:[%s3 + $0x90] sm:$0xff] %v487
    %520 = vst [vmem:[%s3 + $0x98] sm:$0xff] %v488
    %521 = vst [vmem:[%s3 + $0xa0] sm:$0xff] %v489
    %522 = vst [vmem:[%s3 + $0xa8] sm:$0xff] %v490
    %523 = vst [vmem:[%s3 + $0xb0] sm:$0xff] %v491
    %524 = vst [vmem:[%s3 + $0xb8] sm:$0xff] %v492
    %525 = vst [vmem:[%s3 + $0xc0] sm:$0xff] %v493
    %526 = vst [vmem:[%s3 + $0xc8] sm:$0xff] %v494
    %527 = vst [vmem:[%s3 + $0xd0] sm:$0xff] %v495
    %528 = vst [vmem:[%s3 + $0xd8] sm:$0xff] %v496
    %529 = vst [vmem:[%s3 + $0xe0] sm:$0xff] %v497
    %530 = vst [vmem:[%s3 + $0xe8] sm:$0xff] %v498
    %531 = vst [vmem:[%s3 + $0xf0] sm:$0xff] %v499
    %532 = vst [vmem:[%s3 + $0xf8] sm:$0xff] %v500
    %v533 = vadd.f32 %v469, %v471
    %v534 = vadd.f32 %v533, %v473
    %v535 = vadd.f32 %v534, %v475
    %v536 = vadd.f32 %v535, %v477
    %v537 = vadd.f32 %v536, %v479
    %v538 = vadd.f32 %v537, %v481
    %v539 = vadd.f32 %v538, %v483
    %v540 = vadd.f32 %v539, %v485
    %v541 = vadd.f32 %v540, %v487
    %v542 = vadd.f32 %v541, %v489
    %v543 = vadd.f32 %v542, %v491
    %v544 = vadd.f32 %v543, %v493
    %v545 = vadd.f32 %v544, %v495
    %v546 = vadd.f32 %v545, %v497
    %v547 = vadd.f32 %v546, %v499
    %v548 = vrot.slane %v547, 4
    %v549 = vadd.f32 %v547, %v548
    %v550 = vrot.slane %v549, 2
    %v551 = vadd.f32 %v549, %v550
    %v552 = vrot.slane %v551, 1
    %v553 = vadd.f32 %v551, %v552
    %v554 = vadd.f32 %v470, %v472
    %v555 = vadd.f32 %v554, %v474
    %v556 = vadd.f32 %v555, %v476
    %v557 = vadd.f32 %v556, %v478
    %v558 = vadd.f32 %v557, %v480
    %v559 = vadd.f32 %v558, %v482
    %v560 = vadd.f32 %v559, %v484
    %v561 = vadd.f32 %v560, %v486
    %v562 = vadd.f32 %v561, %v488
    %v563 = vadd.f32 %v562, %v490
    %v564 = vadd.f32 %v563, %v492
    %v565 = vadd.f32 %v564, %v494
    %v566 = vadd.f32 %v565, %v496
    %v567 = vadd.f32 %v566, %v498
    %v568 = vadd.f32 %v567, %v500
    %v569 = vrot.slane %v568, 4
    %v570 = vadd.f32 %v568, %v569
    %v571 = vrot.slane %v570, 2
    %v572 = vadd.f32 %v570, %v571
    %v573 = vrot.slane %v572, 1
    %v574 = vadd.f32 %v572, %v573
    %v575 = vmul.f32 %v469, %v469
    %v576 = vmul.f32 %v470, %v470
    %v577 = vmul.f32 %v471, %v471
    %v578 = vmul.f32 %v472, %v472
    %v579 = vmul.f32 %v473, %v473
    %v580 = vmul.f32 %v474, %v474
    %v581 = vmul.f32 %v475, %v475
    %v582 = vmul.f32 %v476, %v476
    %v583 = vmul.f32 %v477, %v477
    %v584 = vmul.f32 %v478, %v478
    %v585 = vmul.f32 %v479, %v479
    %v586 = vmul.f32 %v480, %v480
    %v587 = vmul.f32 %v481, %v481
    %v588 = vmul.f32 %v482, %v482
    %v589 = vmul.f32 %v483, %v483
    %v590 = vmul.f32 %v484, %v484
    %v591 = vmul.f32 %v485, %v485
    %v592 = vmul.f32 %v486, %v486
    %v593 = vmul.f32 %v487, %v487
    %v594 = vmul.f32 %v488, %v488
    %v595 = vmul.f32 %v489, %v489
    %v596 = vmul.f32 %v490, %v490
    %v597 = vmul.f32 %v491, %v491
    %v598 = vmul.f32 %v492, %v492
    %v599 = vmul.f32 %v493, %v493
    %v600 = vmul.f32 %v494, %v494
    %v601 = vmul.f32 %v495, %v495
    %v602 = vmul.f32 %v496, %v496
    %v603 = vmul.f32 %v497, %v497
    %v604 = vmul.f32 %v498, %v498
    %v605 = vmul.f32 %v499, %v499
    %v606 = vmul.f32 %v500, %v500
    %v607 = vadd.f32 %v575, %v577
    %v608 = vadd.f32 %v607, %v579
    %v609 = vadd.f32 %v608, %v581
    %v610 = vadd.f32 %v609, %v583
    %v611 = vadd.f32 %v610, %v585
    %v612 = vadd.f32 %v611, %v587
    %v613 = vadd.f32 %v612, %v589
    %v614 = vadd.f32 %v613, %v591
    %v615 = vadd.f32 %v614, %v593
    %v616 = vadd.f32 %v615, %v595
    %v617 = vadd.f32 %v616, %v597
    %v618 = vadd.f32 %v617, %v599
    %v619 = vadd.f32 %v618, %v601
    %v620 = vadd.f32 %v619, %v603
    %v621 = vadd.f32 %v620, %v605
    %v622 = vrot.slane %v621, 4
    %v623 = vadd.f32 %v621, %v622
    %v624 = vrot.slane %v623, 2
    %v625 = vadd.f32 %v623, %v624
    %v626 = vrot.slane %v625, 1
    %v627 = vadd.f32 %v625, %v626
    %v628 = vadd.f32 %v576, %v578
    %v629 = vadd.f32 %v628, %v580
    %v630 = vadd.f32 %v629, %v582
    %v631 = vadd.f32 %v630, %v584
    %v632 = vadd.f32 %v631, %v586
    %v633 = vadd.f32 %v632, %v588
    %v634 = vadd.f32 %v633, %v590
    %v635 = vadd.f32 %v634, %v592
    %v636 = vadd.f32 %v635, %v594
    %v637 = vadd.f32 %v636, %v596
    %v638 = vadd.f32 %v637, %v598
    %v639 = vadd.f32 %v638, %v600
    %v640 = vadd.f32 %v639, %v602
    %v641 = vadd.f32 %v640, %v604
    %v642 = vadd.f32 %v641, %v606
    %v643 = vrot.slane %v642, 4
    %v644 = vadd.f32 %v642, %v643
    %v645 = vrot.slane %v644, 2
    %v646 = vadd.f32 %v644, %v645
    %v647 = vrot.slane %v646, 1
    %v648 = vadd.f32 %v646, %v647
    %v649 = vlaneseq
    %v650 = vshrl.u32 %v649, 7
    %vm651 = vcmp.eq.s32.totalorder %v650, 0
    %vm652 = vcmp.eq.s32.totalorder %v650, 1
    %v653 = vsel %vm652, %v627, 0.0
    %v654 = vsel %vm652, %v648, 0.0
    %v655 = vsel %vm651, %v553, %v653
    %v656 = vsel %vm651, %v574, %v654
    %657 = vst [vmem:[%s4] sm:$0xff] %v655
    %658 = vst [vmem:[%s4 + $0x8] sm:$0xff] %v656
  $region21: #{basicblock_forward.4} parent=0 // pred_fallthru
    _
  // Predicated region
  $region22: #{basicblock_forward.4} parent=0 // pred_check
    _
  $region23: #{basicblock_forward.4} parent=0 // pred_check_branch
    %660 = sbr.rel (0) target = $region25
  $region24: #{basicblock_forward.4} parent=0 // pred_region
    _
  $region25: #{basicblock_forward.4} parent=0 // pred_fallthru
    _
  // Predicated region
  $region26: #{basicblock_forward.4} parent=0 // pred_check
    _
  $region27: #{basicblock_forward.4} parent=0 // pred_check_branch
    %662 = sbr.rel (0) target = $region29
  $region28: #{basicblock_forward.4} parent=0 // pred_region
    _
  $region29: #{basicblock_forward.4} parent=0 // pred_fallthru
    _
  // Predicated region
  $region30: #{basicblock_forward.4} parent=0 // pred_check
    _
  $region31: #{basicblock_forward.4} parent=0 // pred_check_branch
    %664 = sbr.rel (0) target = $region33
  $region32: #{basicblock_forward.4} parent=0 // pred_region
    _
  $region33: #{basicblock_forward.4} parent=0 // pred_fallthru
    _
  // Predicated region
  $region34: #{basicblock_forward.4} parent=0 // pred_check
    _
  $region35: #{basicblock_forward.4} parent=0 // pred_check_branch
    %666 = sbr.rel (0) target = $region37
  $region36: #{basicblock_forward.4} parent=0 // pred_region
    _
  $region37: #{basicblock_forward.4} parent=0 // pred_fallthru
    _

// kernel: basicblock_forward.7
$region0: #{basicblock_forward.7}
  #allocation0 [shape = 'u32[]', space=smem, size = 0x4, offset = 0x4, fixed_abs, tag = 'smem constant byte address 0x4 - core index']
  #allocation1 [shape = 'u32[144,128]{1,0:T(1,128)}', space=vmem, size = 0x12000, scoped, tag = 'internal scratch']
  %s0 = inlined_call_operand.vmem [shape: f32[128,128], index: 0, kind: input, shape index: {}]
  %s1 = inlined_call_operand.vmem [shape: f32[1,128], index: 1, kind: input, shape index: {}]
  %s2 = inlined_call_operand.vmem [shape: f32[1,128], index: 2, kind: input, shape index: {}]
  %s3 = inlined_call_operand.vmem [shape: f32[1,128], index: 3, kind: input, shape index: {}]
  %s4 = inlined_call_operand.vmem [shape: f32[128,128], index: 4, kind: input, shape index: {}]
  %s5 = inlined_call_operand.vmem [shape: f32[128,128], index: 5, kind: output, shape index: {}]
  %s6 = sld [smem:[#allocation0]]
  $region30: #{basicblock_forward.7} parent=0
    _
  %s8 = ssub.s32 1, %s6
  %s9 = scalar_select 0, %s8, %s6
  // Predicated region
  $region2: #{basicblock_forward.7} parent=0 // pred_check
    _
  $region3: #{basicblock_forward.7} parent=0 // pred_check_branch
    %11 = sbr.rel (0) target = $region5
  $region4: #{basicblock_forward.7} parent=0 // pred_region
    _
  $region5: #{basicblock_forward.7} parent=0 // pred_fallthru
    _
  // Predicated region
  $region6: #{basicblock_forward.7} parent=0 // pred_check
    _
  $region7: #{basicblock_forward.7} parent=0 // pred_check_branch
    %13 = sbr.rel (0) target = $region9
  $region8: #{basicblock_forward.7} parent=0 // pred_region
    _
  $region9: #{basicblock_forward.7} parent=0 // pred_fallthru
    _
  // Predicated region
  $region10: #{basicblock_forward.7} parent=0 // pred_check
    _
  $region11: #{basicblock_forward.7} parent=0 // pred_check_branch
    %15 = sbr.rel (0) target = $region13
  $region12: #{basicblock_forward.7} parent=0 // pred_region
    _
  $region13: #{basicblock_forward.7} parent=0 // pred_fallthru
    _
  // Predicated region
  $region14: #{basicblock_forward.7} parent=0 // pred_check
    _
  $region15: #{basicblock_forward.7} parent=0 // pred_check_branch
    %17 = sbr.rel (0) target = $region17
  $region16: #{basicblock_forward.7} parent=0 // pred_region
    _
  $region17: #{basicblock_forward.7} parent=0 // pred_fallthru
    _
  // Predicated region
  $region18: #{basicblock_forward.7} parent=0 // pred_check
    _
  $region19: #{basicblock_forward.7} parent=0 // pred_check_branch
    %19 = sbr.rel (0) target = $region21
  $region20: #{basicblock_forward.7} parent=0 // pred_region
    _
  $region21: #{basicblock_forward.7} parent=0 // pred_fallthru
    _
  %v20 = vld [vmem:[%s0] sm:$0xff]
  %v21 = vld [vmem:[%s0 + $0x8] sm:$0xff]
  %v22 = vld [vmem:[%s0 + $0x10] sm:$0xff]
  %v23 = vld [vmem:[%s0 + $0x18] sm:$0xff]
  %v24 = vld [vmem:[%s0 + $0x20] sm:$0xff]
  %v25 = vld [vmem:[%s0 + $0x28] sm:$0xff]
  %v26 = vld [vmem:[%s0 + $0x30] sm:$0xff]
  %v27 = vld [vmem:[%s0 + $0x38] sm:$0xff]
  %v28 = vld [vmem:[%s0 + $0x40] sm:$0xff]
  %v29 = vld [vmem:[%s0 + $0x48] sm:$0xff]
  %v30 = vld [vmem:[%s0 + $0x50] sm:$0xff]
  %v31 = vld [vmem:[%s0 + $0x58] sm:$0xff]
  %v32 = vld [vmem:[%s0 + $0x60] sm:$0xff]
  %v33 = vld [vmem:[%s0 + $0x68] sm:$0xff]
  %v34 = vld [vmem:[%s0 + $0x70] sm:$0xff]
  %v35 = vld [vmem:[%s0 + $0x78] sm:$0xff]
  %v36 = vld [vmem:[%s1] sm:$0x1]
  %v38 = vlaneseq
  %v39 = vshrl.u32 %v38, 7
  %v40 = vsub.s32 0, %v39
  %v41 = vrot.slane %v36, %v40
  %v43 = vmul.f32 %v20, %v41
  %v44 = vmul.f32 %v21, %v41
  %v45 = vmul.f32 %v22, %v41
  %v46 = vmul.f32 %v23, %v41
  %v47 = vmul.f32 %v24, %v41
  %v48 = vmul.f32 %v25, %v41
  %v49 = vmul.f32 %v26, %v41
  %v50 = vmul.f32 %v27, %v41
  %v51 = vmul.f32 %v28, %v41
  %v52 = vmul.f32 %v29, %v41
  %v53 = vmul.f32 %v30, %v41
  %v54 = vmul.f32 %v31, %v41
  %v55 = vmul.f32 %v32, %v41
  %v56 = vmul.f32 %v33, %v41
  %v57 = vmul.f32 %v34, %v41
  %v58 = vmul.f32 %v35, %v41
  %v59 = vld [vmem:[%s2] sm:$0x1]
  %v61 = vlaneseq
  %v62 = vshrl.u32 %v61, 7
  %v63 = vsub.s32 0, %v62
  %v64 = vrot.slane %v59, %v63
  %v66 = vadd.f32 %v43, %v64
  %v67 = vadd.f32 %v44, %v64
  %v68 = vadd.f32 %v45, %v64
  %v69 = vadd.f32 %v46, %v64
  %v70 = vadd.f32 %v47, %v64
  %v71 = vadd.f32 %v48, %v64
  %v72 = vadd.f32 %v49, %v64
  %v73 = vadd.f32 %v50, %v64
  %v74 = vadd.f32 %v51, %v64
  %v75 = vadd.f32 %v52, %v64
  %v76 = vadd.f32 %v53, %v64
  %v77 = vadd.f32 %v54, %v64
  %v78 = vadd.f32 %v55, %v64
  %v79 = vadd.f32 %v56, %v64
  %v80 = vadd.f32 %v57, %v64
  %v81 = vadd.f32 %v58, %v64
  %v82 = vld [vmem:[%s4] sm:$0xff]
  %v83 = vld [vmem:[%s4 + $0x8] sm:$0xff]
  %v84 = vld [vmem:[%s4 + $0x10] sm:$0xff]
  %v85 = vld [vmem:[%s4 + $0x18] sm:$0xff]
  %v86 = vld [vmem:[%s4 + $0x20] sm:$0xff]
  %v87 = vld [vmem:[%s4 + $0x28] sm:$0xff]
  %v88 = vld [vmem:[%s4 + $0x30] sm:$0xff]
  %v89 = vld [vmem:[%s4 + $0x38] sm:$0xff]
  %v90 = vld [vmem:[%s4 + $0x40] sm:$0xff]
  %v91 = vld [vmem:[%s4 + $0x48] sm:$0xff]
  %v92 = vld [vmem:[%s4 + $0x50] sm:$0xff]
  %v93 = vld [vmem:[%s4 + $0x58] sm:$0xff]
  %v94 = vld [vmem:[%s4 + $0x60] sm:$0xff]
  %v95 = vld [vmem:[%s4 + $0x68] sm:$0xff]
  %v96 = vld [vmem:[%s4 + $0x70] sm:$0xff]
  %v97 = vld [vmem:[%s4 + $0x78] sm:$0xff]
  %v98 = vadd.f32 %v66, %v82
  %v99 = vadd.f32 %v67, %v83
  %v100 = vadd.f32 %v68, %v84
  %v101 = vadd.f32 %v69, %v85
  %v102 = vadd.f32 %v70, %v86
  %v103 = vadd.f32 %v71, %v87
  %v104 = vadd.f32 %v72, %v88
  %v105 = vadd.f32 %v73, %v89
  %v106 = vadd.f32 %v74, %v90
  %v107 = vadd.f32 %v75, %v91
  %v108 = vadd.f32 %v76, %v92
  %v109 = vadd.f32 %v77, %v93
  %v110 = vadd.f32 %v78, %v94
  %v111 = vadd.f32 %v79, %v95
  %v112 = vadd.f32 %v80, %v96
  %v113 = vadd.f32 %v81, %v97
  %v114 = vld [vmem:[%s3] sm:$0x1]
  %vm115 = vcmp.gt.f32.partialorder %v114, 0.0
  %v116 = vmax.f32 %v98, 0.0
  %v117 = vmax.f32 %v99, 0.0
  %v118 = vmax.f32 %v100, 0.0
  %v119 = vmax.f32 %v101, 0.0
  %v120 = vmax.f32 %v102, 0.0
  %v121 = vmax.f32 %v103, 0.0
  %v122 = vmax.f32 %v104, 0.0
  %v123 = vmax.f32 %v105, 0.0
  %v124 = vmax.f32 %v106, 0.0
  %v125 = vmax.f32 %v107, 0.0
  %v126 = vmax.f32 %v108, 0.0
  %v127 = vmax.f32 %v109, 0.0
  %v128 = vmax.f32 %v110, 0.0
  %v129 = vmax.f32 %v111, 0.0
  %v130 = vmax.f32 %v112, 0.0
  %v131 = vmax.f32 %v113, 0.0
  %v132 = vsel %vm115, 1, 0
  %v133 = vlaneseq
  %v134 = vshrl.u32 %v133, 7
  %v135 = vsub.s32 0, %v134
  %v136 = vrot.slane %v132, %v135
  %vm137 = vcmp.eq.s32.totalorder %v136, 1
  %v138 = vsel %vm137, %v116, %v98
  %v139 = vsel %vm137, %v117, %v99
  %v140 = vsel %vm137, %v118, %v100
  %v141 = vsel %vm137, %v119, %v101
  %v142 = vsel %vm137, %v120, %v102
  %v143 = vsel %vm137, %v121, %v103
  %v144 = vsel %vm137, %v122, %v104
  %v145 = vsel %vm137, %v123, %v105
  %v146 = vsel %vm137, %v124, %v106
  %v147 = vsel %vm137, %v125, %v107
  %v148 = vsel %vm137, %v126, %v108
  %v149 = vsel %vm137, %v127, %v109
  %v150 = vsel %vm137, %v128, %v110
  %v151 = vsel %vm137, %v129, %v111
  %v152 = vsel %vm137, %v130, %v112
  %v153 = vsel %vm137, %v131, %v113
  %154 = vst [vmem:[%s5] sm:$0xff] %v138
  %155 = vst [vmem:[%s5 + $0x8] sm:$0xff] %v139
  %156 = vst [vmem:[%s5 + $0x10] sm:$0xff] %v140
  %157 = vst [vmem:[%s5 + $0x18] sm:$0xff] %v141
  %158 = vst [vmem:[%s5 + $0x20] sm:$0xff] %v142
  %159 = vst [vmem:[%s5 + $0x28] sm:$0xff] %v143
  %160 = vst [vmem:[%s5 + $0x30] sm:$0xff] %v144
  %161 = vst [vmem:[%s5 + $0x38] sm:$0xff] %v145
  %162 = vst [vmem:[%s5 + $0x40] sm:$0xff] %v146
  %163 = vst [vmem:[%s5 + $0x48] sm:$0xff] %v147
  %164 = vst [vmem:[%s5 + $0x50] sm:$0xff] %v148
  %165 = vst [vmem:[%s5 + $0x58] sm:$0xff] %v149
  %166 = vst [vmem:[%s5 + $0x60] sm:$0xff] %v150
  %167 = vst [vmem:[%s5 + $0x68] sm:$0xff] %v151
  %168 = vst [vmem:[%s5 + $0x70] sm:$0xff] %v152
  %169 = vst [vmem:[%s5 + $0x78] sm:$0xff] %v153
  // Predicated region
  $region22: #{basicblock_forward.7} parent=0 // pred_check
    _
  $region23: #{basicblock_forward.7} parent=0 // pred_check_branch
    %171 = sbr.rel (0) target = $region25
  $region24: #{basicblock_forward.7} parent=0 // pred_region
    _
  $region25: #{basicblock_forward.7} parent=0 // pred_fallthru
    _
  // Predicated region
  $region26: #{basicblock_forward.7} parent=0 // pred_check
    _
  $region27: #{basicblock_forward.7} parent=0 // pred_check_branch
    %173 = sbr.rel (0) target = $region29
  $region28: #{basicblock_forward.7} parent=0 // pred_region
    _
  $region29: #{basicblock_forward.7} parent=0 // pred_fallthru
    _

// kernel: basicblock_forward.6
$region0: #{basicblock_forward.6}
  #allocation0 [shape = 'u32[]', space=smem, size = 0x4, offset = 0x4, fixed_abs, tag = 'smem constant byte address 0x4 - core index']
  #allocation1 [shape = 'u32[144,128]{1,0:T(1,128)}', space=vmem, size = 0x12000, scoped, tag = 'internal scratch']
  #allocation2 [shape = 'f32[128,128]{1,0:T(8,128)}', space=vmem, size = 0x10000, scoped, tag = 'scratch operand']
  %s0 = inlined_call_operand.vmem [shape: bf16[128,128], index: 0, kind: input, shape index: {}]
  %s1 = inlined_call_operand.vmem [shape: bf16[128,128], index: 1, kind: input, shape index: {}]
  %s2 = inlined_call_operand.vmem [shape: f32[1,128], index: 2, kind: input, shape index: {}]
  %s3 = inlined_call_operand.vmem [shape: f32[128,128], index: 3, kind: output, shape index: {0}]
  %s4 = inlined_call_operand.vmem [shape: f32[8,128], index: 4, kind: output, shape index: {1}]
  %5 = xla_tuple %s3, %s4
  %s6 = sld [smem:[#allocation0]]
  $region38: #{basicblock_forward.6} parent=0
    _
  %s8 = ssub.s32 1, %s6
  %s9 = scalar_select 0, %s8, %s6
  // Predicated region
  $region2: #{basicblock_forward.6} parent=0 // pred_check
    _
  $region3: #{basicblock_forward.6} parent=0 // pred_check_branch
    %11 = sbr.rel (0) target = $region5
  $region4: #{basicblock_forward.6} parent=0 // pred_region
    _
  $region5: #{basicblock_forward.6} parent=0 // pred_fallthru
    _
  // Predicated region
  $region6: #{basicblock_forward.6} parent=0 // pred_check
    _
  $region7: #{basicblock_forward.6} parent=0 // pred_check_branch
    %13 = sbr.rel (0) target = $region9
  $region8: #{basicblock_forward.6} parent=0 // pred_region
    _
  $region9: #{basicblock_forward.6} parent=0 // pred_fallthru
    _
  // Predicated region
  $region10: #{basicblock_forward.6} parent=0 // pred_check
    _
  $region11: #{basicblock_forward.6} parent=0 // pred_check_branch
    %15 = sbr.rel (0) target = $region13
  $region12: #{basicblock_forward.6} parent=0 // pred_region
    _
  $region13: #{basicblock_forward.6} parent=0 // pred_fallthru
    _
  %p17 = scmp.eq.s32.totalorder 0, 0
  // Predicated region
  $region14: #{basicblock_forward.6} parent=0 // pred_check
    %p18 = pneg %p17
  $region15: #{basicblock_forward.6} parent=0 // pred_check_branch
    %20 = sbr.rel (%p18) target = $region17
  $region16: #{basicblock_forward.6} parent=0 // pred_region
    %21 = vst [vmem:[#allocation2] sm:$0xff] 0.0
    %22 = vst [vmem:[#allocation2 + $0x8] sm:$0xff] 0.0
    %23 = vst [vmem:[#allocation2 + $0x10] sm:$0xff] 0.0
    %24 = vst [vmem:[#allocation2 + $0x18] sm:$0xff] 0.0
    %25 = vst [vmem:[#allocation2 + $0x20] sm:$0xff] 0.0
    %26 = vst [vmem:[#allocation2 + $0x28] sm:$0xff] 0.0
    %27 = vst [vmem:[#allocation2 + $0x30] sm:$0xff] 0.0
    %28 = vst [vmem:[#allocation2 + $0x38] sm:$0xff] 0.0
    %29 = vst [vmem:[#allocation2 + $0x40] sm:$0xff] 0.0
    %30 = vst [vmem:[#allocation2 + $0x48] sm:$0xff] 0.0
    %31 = vst [vmem:[#allocation2 + $0x50] sm:$0xff] 0.0
    %32 = vst [vmem:[#allocation2 + $0x58] sm:$0xff] 0.0
    %33 = vst [vmem:[#allocation2 + $0x60] sm:$0xff] 0.0
    %34 = vst [vmem:[#allocation2 + $0x68] sm:$0xff] 0.0
    %35 = vst [vmem:[#allocation2 + $0x70] sm:$0xff] 0.0
    %36 = vst [vmem:[#allocation2 + $0x78] sm:$0xff] 0.0
  $region17: #{basicblock_forward.6} parent=0 // pred_fallthru
    _
  %v37 = vld [vmem:[#allocation2] sm:$0xff]
  %v38 = vld [vmem:[#allocation2 + $0x8] sm:$0xff]
  %v39 = vld [vmem:[#allocation2 + $0x10] sm:$0xff]
  %v40 = vld [vmem:[#allocation2 + $0x18] sm:$0xff]
  %v41 = vld [vmem:[#allocation2 + $0x20] sm:$0xff]
  %v42 = vld [vmem:[#allocation2 + $0x28] sm:$0xff]
  %v43 = vld [vmem:[#allocation2 + $0x30] sm:$0xff]
  %v44 = vld [vmem:[#allocation2 + $0x38] sm:$0xff]
  %v45 = vld [vmem:[#allocation2 + $0x40] sm:$0xff]
  %v46 = vld [vmem:[#allocation2 + $0x48] sm:$0xff]
  %v47 = vld [vmem:[#allocation2 + $0x50] sm:$0xff]
  %v48 = vld [vmem:[#allocation2 + $0x58] sm:$0xff]
  %v49 = vld [vmem:[#allocation2 + $0x60] sm:$0xff]
  %v50 = vld [vmem:[#allocation2 + $0x68] sm:$0xff]
  %v51 = vld [vmem:[#allocation2 + $0x70] sm:$0xff]
  %v52 = vld [vmem:[#allocation2 + $0x78] sm:$0xff]
  %v53 = vld [vmem:[%s0] sm:$0xf]
  %v54 = vld [vmem:[%s0 + $0x4] sm:$0xf]
  %v55 = vld [vmem:[%s0 + $0x8] sm:$0xf]
  %v56 = vld [vmem:[%s0 + $0xc] sm:$0xf]
  %v57 = vld [vmem:[%s0 + $0x10] sm:$0xf]
  %v58 = vld [vmem:[%s0 + $0x14] sm:$0xf]
  %v59 = vld [vmem:[%s0 + $0x18] sm:$0xf]
  %v60 = vld [vmem:[%s0 + $0x1c] sm:$0xf]
  %v61 = vld [vmem:[%s0 + $0x20] sm:$0xf]
  %v62 = vld [vmem:[%s0 + $0x24] sm:$0xf]
  %v63 = vld [vmem:[%s0 + $0x28] sm:$0xf]
  %v64 = vld [vmem:[%s0 + $0x2c] sm:$0xf]
  %v65 = vld [vmem:[%s0 + $0x30] sm:$0xf]
  %v66 = vld [vmem:[%s0 + $0x34] sm:$0xf]
  %v67 = vld [vmem:[%s0 + $0x38] sm:$0xf]
  %v68 = vld [vmem:[%s0 + $0x3c] sm:$0xf]
  %v69 = vld [vmem:[%s1] sm:$0xf]
  %v70 = vld [vmem:[%s1 + $0x4] sm:$0xf]
  %v71 = vld [vmem:[%s1 + $0x8] sm:$0xf]
  %v72 = vld [vmem:[%s1 + $0xc] sm:$0xf]
  %v73 = vld [vmem:[%s1 + $0x10] sm:$0xf]
  %v74 = vld [vmem:[%s1 + $0x14] sm:$0xf]
  %v75 = vld [vmem:[%s1 + $0x18] sm:$0xf]
  %v76 = vld [vmem:[%s1 + $0x1c] sm:$0xf]
  %v77 = vld [vmem:[%s1 + $0x20] sm:$0xf]
  %v78 = vld [vmem:[%s1 + $0x24] sm:$0xf]
  %v79 = vld [vmem:[%s1 + $0x28] sm:$0xf]
  %v80 = vld [vmem:[%s1 + $0x2c] sm:$0xf]
  %v81 = vld [vmem:[%s1 + $0x30] sm:$0xf]
  %v82 = vld [vmem:[%s1 + $0x34] sm:$0xf]
  %v83 = vld [vmem:[%s1 + $0x38] sm:$0xf]
  %v84 = vld [vmem:[%s1 + $0x3c] sm:$0xf]
  %v101 = vunpack.c.l.b16 %v53
  %v102 = vunpack.c.l.b16 %v54
  %v103 = vunpack.c.l.b16 %v55
  %v104 = vunpack.c.l.b16 %v56
  %v105 = vunpack.c.l.b16 %v57
  %v106 = vunpack.c.l.b16 %v58
  %v107 = vunpack.c.l.b16 %v59
  %v108 = vunpack.c.l.b16 %v60
  %v109 = vunpack.c.l.b16 %v61
  %v110 = vunpack.c.l.b16 %v62
  %v111 = vunpack.c.l.b16 %v63
  %v112 = vunpack.c.l.b16 %v64
  %v113 = vunpack.c.l.b16 %v65
  %v114 = vunpack.c.l.b16 %v66
  %v115 = vunpack.c.l.b16 %v67
  %v116 = vunpack.c.l.b16 %v68
  %v117 = vpack.c.b16 %v102, %v101
  %v118 = vpack.c.b16 %v104, %v103
  %v119 = vpack.c.b16 %v106, %v105
  %v120 = vpack.c.b16 %v108, %v107
  %v121 = vpack.c.b16 %v110, %v109
  %v122 = vpack.c.b16 %v112, %v111
  %v123 = vpack.c.b16 %v114, %v113
  %v124 = vpack.c.b16 %v116, %v115
  %v149 = vunpack.c.l.b16 %v69
  %v150 = vunpack.c.l.b16 %v70
  %v151 = vunpack.c.l.b16 %v71
  %v152 = vunpack.c.l.b16 %v72
  %v153 = vunpack.c.l.b16 %v73
  %v154 = vunpack.c.l.b16 %v74
  %v155 = vunpack.c.l.b16 %v75
  %v156 = vunpack.c.l.b16 %v76
  %v157 = vunpack.c.l.b16 %v77
  %v158 = vunpack.c.l.b16 %v78
  %v159 = vunpack.c.l.b16 %v79
  %v160 = vunpack.c.l.b16 %v80
  %v161 = vunpack.c.l.b16 %v81
  %v162 = vunpack.c.l.b16 %v82
  %v163 = vunpack.c.l.b16 %v83
  %v164 = vunpack.c.l.b16 %v84
  %v165 = vpack.c.b16 %v150, %v149
  %v166 = vpack.c.b16 %v152, %v151
  %v167 = vpack.c.b16 %v154, %v153
  %v168 = vpack.c.b16 %v156, %v155
  %v169 = vpack.c.b16 %v158, %v157
  %v170 = vpack.c.b16 %v160, %v159
  %v171 = vpack.c.b16 %v162, %v161
  %v172 = vpack.c.b16 %v164, %v163
  %181 = vmatprep.subr.bf16.mxu0 0
  %182 = vmatpush1.bf16.msra.mxu0 %v172
  %183 = vmatprep.subr.bf16.mxu0 0
  %184 = vmatpush1.bf16.msra.mxu0 %v171
  %185 = vmatprep.subr.bf16.mxu0 0
  %186 = vmatpush1.bf16.msra.mxu0 %v170
  %187 = vmatprep.subr.bf16.mxu0 0
  %188 = vmatpush1.bf16.msra.mxu0 %v169
  %189 = vmatprep.subr.bf16.mxu0 0
  %190 = vmatpush1.bf16.msra.mxu0 %v168
  %191 = vmatprep.subr.bf16.mxu0 0
  %192 = vmatpush1.bf16.msra.mxu0 %v167
  %193 = vmatprep.subr.bf16.mxu0 0
  %194 = vmatpush1.bf16.msra.mxu0 %v166
  %195 = vmatprep.subr.bf16.mxu0 0
  %196 = vmatpush1.bf16.msra.mxu0 %v165
  %197 = vmatprep.subr.bf16.mxu0 0
  %198 = vmatpush2.bf16.msra.mxu0 0
  %199 = vmatprep.subr.bf16.mxu0 0
  %200 = vmatpush2.bf16.msra.mxu0 0
  %201 = vmatprep.subr.bf16.mxu0 0
  %202 = vmatpush2.bf16.msra.mxu0 0
  %203 = vmatprep.subr.bf16.mxu0 0
  %204 = vmatpush2.bf16.msra.mxu0 0
  %205 = vmatprep.subr.bf16.mxu0 0
  %206 = vmatpush2.bf16.msra.mxu0 0
  %207 = vmatprep.subr.bf16.mxu0 0
  %208 = vmatpush2.bf16.msra.mxu0 0
  %209 = vmatprep.subr.bf16.mxu0 0
  %210 = vmatpush2.bf16.msra.mxu0 0
  %211 = vmatprep.subr.bf16.mxu0 0
  %212 = vmatpush2.bf16.msra.mxu0 0
  %213 = vmatprep.mubr.bf16.mxu0 0
  %214 = vmatmul.mubr.bf16.gmra.mxu0 %v117
  %v215 = vpop.f32.mrf.mxu0
  %v216 = vadd.f32 0.0, %v215
  %v217 = vpop.f32.mrf.mxu0
  %v218 = vpop.f32.mrf.mxu0
  %v219 = vadd.f32 0.0, %v218
  %v220 = vpop.f32.mrf.mxu0
  %221 = vmatprep.mubr.bf16.mxu0 0
  %222 = vmatmul.mubr.bf16.gmra.mxu0 %v118
  %v223 = vpop.f32.mrf.mxu0
  %v224 = vadd.f32 0.0, %v223
  %v225 = vpop.f32.mrf.mxu0
  %v226 = vpop.f32.mrf.mxu0
  %v227 = vadd.f32 0.0, %v226
  %v228 = vpop.f32.mrf.mxu0
  %229 = vmatprep.mubr.bf16.mxu0 0
  %230 = vmatmul.mubr.bf16.gmra.mxu0 %v119
  %v231 = vpop.f32.mrf.mxu0
  %v232 = vadd.f32 0.0, %v231
  %v233 = vpop.f32.mrf.mxu0
  %v234 = vpop.f32.mrf.mxu0
  %v235 = vadd.f32 0.0, %v234
  %v236 = vpop.f32.mrf.mxu0
  %237 = vmatprep.mubr.bf16.mxu0 0
  %238 = vmatmul.mubr.bf16.gmra.mxu0 %v120
  %v239 = vpop.f32.mrf.mxu0
  %v240 = vadd.f32 0.0, %v239
  %v241 = vpop.f32.mrf.mxu0
  %v242 = vpop.f32.mrf.mxu0
  %v243 = vadd.f32 0.0, %v242
  %v244 = vpop.f32.mrf.mxu0
  %245 = vmatprep.mubr.bf16.mxu0 0
  %246 = vmatmul.mubr.bf16.gmra.mxu0 %v121
  %v247 = vpop.f32.mrf.mxu0
  %v248 = vadd.f32 0.0, %v247
  %v249 = vpop.f32.mrf.mxu0
  %v250 = vpop.f32.mrf.mxu0
  %v251 = vadd.f32 0.0, %v250
  %v252 = vpop.f32.mrf.mxu0
  %253 = vmatprep.mubr.bf16.mxu0 0
  %254 = vmatmul.mubr.bf16.gmra.mxu0 %v122
  %v255 = vpop.f32.mrf.mxu0
  %v256 = vadd.f32 0.0, %v255
  %v257 = vpop.f32.mrf.mxu0
  %v258 = vpop.f32.mrf.mxu0
  %v259 = vadd.f32 0.0, %v258
  %v260 = vpop.f32.mrf.mxu0
  %261 = vmatprep.mubr.bf16.mxu0 0
  %262 = vmatmul.mubr.bf16.gmra.mxu0 %v123
  %v263 = vpop.f32.mrf.mxu0
  %v264 = vadd.f32 0.0, %v263
  %v265 = vpop.f32.mrf.mxu0
  %v266 = vpop.f32.mrf.mxu0
  %v267 = vadd.f32 0.0, %v266
  %v268 = vpop.f32.mrf.mxu0
  %269 = vmatprep.mubr.bf16.mxu0 0
  %270 = vmatmul.mubr.bf16.gmra.mxu0 %v124
  %v271 = vpop.f32.mrf.mxu0
  %v272 = vadd.f32 0.0, %v271
  %v273 = vpop.f32.mrf.mxu0
  %v274 = vpop.f32.mrf.mxu0
  %v275 = vadd.f32 0.0, %v274
  %v276 = vpop.f32.mrf.mxu0
  %277 = vdwg.mxu0
  %v278 = vadd.f32 %v37, %v216
  %v279 = vadd.f32 %v38, %v219
  %v280 = vadd.f32 %v39, %v224
  %v281 = vadd.f32 %v40, %v227
  %v282 = vadd.f32 %v41, %v232
  %v283 = vadd.f32 %v42, %v235
  %v284 = vadd.f32 %v43, %v240
  %v285 = vadd.f32 %v44, %v243
  %v286 = vadd.f32 %v45, %v248
  %v287 = vadd.f32 %v46, %v251
  %v288 = vadd.f32 %v47, %v256
  %v289 = vadd.f32 %v48, %v259
  %v290 = vadd.f32 %v49, %v264
  %v291 = vadd.f32 %v50, %v267
  %v292 = vadd.f32 %v51, %v272
  %v293 = vadd.f32 %v52, %v275
  %294 = vst [vmem:[#allocation2] sm:$0xff] %v278
  %295 = vst [vmem:[#allocation2 + $0x8] sm:$0xff] %v279
  %296 = vst [vmem:[#allocation2 + $0x10] sm:$0xff] %v280
  %297 = vst [vmem:[#allocation2 + $0x18] sm:$0xff] %v281
  %298 = vst [vmem:[#allocation2 + $0x20] sm:$0xff] %v282
  %299 = vst [vmem:[#allocation2 + $0x28] sm:$0xff] %v283
  %300 = vst [vmem:[#allocation2 + $0x30] sm:$0xff] %v284
  %301 = vst [vmem:[#allocation2 + $0x38] sm:$0xff] %v285
  %302 = vst [vmem:[#allocation2 + $0x40] sm:$0xff] %v286
  %303 = vst [vmem:[#allocation2 + $0x48] sm:$0xff] %v287
  %304 = vst [vmem:[#allocation2 + $0x50] sm:$0xff] %v288
  %305 = vst [vmem:[#allocation2 + $0x58] sm:$0xff] %v289
  %306 = vst [vmem:[#allocation2 + $0x60] sm:$0xff] %v290
  %307 = vst [vmem:[#allocation2 + $0x68] sm:$0xff] %v291
  %308 = vst [vmem:[#allocation2 + $0x70] sm:$0xff] %v292
  %309 = vst [vmem:[#allocation2 + $0x78] sm:$0xff] %v293
  // Predicated region
  $region18: #{basicblock_forward.6} parent=0 // pred_check
    %p310 = pneg %p17
  $region19: #{basicblock_forward.6} parent=0 // pred_check_branch
    %312 = sbr.rel (%p310) target = $region21
  $region20: #{basicblock_forward.6} parent=0 // pred_region
    %v313 = vld [vmem:[#allocation2] sm:$0xff]
    %v314 = vld [vmem:[#allocation2 + $0x8] sm:$0xff]
    %v315 = vld [vmem:[#allocation2 + $0x10] sm:$0xff]
    %v316 = vld [vmem:[#allocation2 + $0x18] sm:$0xff]
    %v317 = vld [vmem:[#allocation2 + $0x20] sm:$0xff]
    %v318 = vld [vmem:[#allocation2 + $0x28] sm:$0xff]
    %v319 = vld [vmem:[#allocation2 + $0x30] sm:$0xff]
    %v320 = vld [vmem:[#allocation2 + $0x38] sm:$0xff]
    %v321 = vld [vmem:[#allocation2 + $0x40] sm:$0xff]
    %v322 = vld [vmem:[#allocation2 + $0x48] sm:$0xff]
    %v323 = vld [vmem:[#allocation2 + $0x50] sm:$0xff]
    %v324 = vld [vmem:[#allocation2 + $0x58] sm:$0xff]
    %v325 = vld [vmem:[#allocation2 + $0x60] sm:$0xff]
    %v326 = vld [vmem:[#allocation2 + $0x68] sm:$0xff]
    %v327 = vld [vmem:[#allocation2 + $0x70] sm:$0xff]
    %v328 = vld [vmem:[#allocation2 + $0x78] sm:$0xff]
    %v329 = vld [vmem:[%s2] sm:$0x1]
    %v331 = vlaneseq
    %v332 = vshrl.u32 %v331, 7
    %v333 = vsub.s32 0, %v332
    %v334 = vrot.slane %v329, %v333
    %v336 = vadd.f32 %v313, %v334
    %v337 = vadd.f32 %v314, %v334
    %v338 = vadd.f32 %v315, %v334
    %v339 = vadd.f32 %v316, %v334
    %v340 = vadd.f32 %v317, %v334
    %v341 = vadd.f32 %v318, %v334
    %v342 = vadd.f32 %v319, %v334
    %v343 = vadd.f32 %v320, %v334
    %v344 = vadd.f32 %v321, %v334
    %v345 = vadd.f32 %v322, %v334
    %v346 = vadd.f32 %v323, %v334
    %v347 = vadd.f32 %v324, %v334
    %v348 = vadd.f32 %v325, %v334
    %v349 = vadd.f32 %v326, %v334
    %v350 = vadd.f32 %v327, %v334
    %v351 = vadd.f32 %v328, %v334
    %352 = vst [vmem:[%s3] sm:$0xff] %v336
    %353 = vst [vmem:[%s3 + $0x8] sm:$0xff] %v337
    %354 = vst [vmem:[%s3 + $0x10] sm:$0xff] %v338
    %355 = vst [vmem:[%s3 + $0x18] sm:$0xff] %v339
    %356 = vst [vmem:[%s3 + $0x20] sm:$0xff] %v340
    %357 = vst [vmem:[%s3 + $0x28] sm:$0xff] %v341
    %358 = vst [vmem:[%s3 + $0x30] sm:$0xff] %v342
    %359 = vst [vmem:[%s3 + $0x38] sm:$0xff] %v343
    %360 = vst [vmem:[%s3 + $0x40] sm:$0xff] %v344
    %361 = vst [vmem:[%s3 + $0x48] sm:$0xff] %v345
    %362 = vst [vmem:[%s3 + $0x50] sm:$0xff] %v346
    %363 = vst [vmem:[%s3 + $0x58] sm:$0xff] %v347
    %364 = vst [vmem:[%s3 + $0x60] sm:$0xff] %v348
    %365 = vst [vmem:[%s3 + $0x68] sm:$0xff] %v349
    %366 = vst [vmem:[%s3 + $0x70] sm:$0xff] %v350
    %367 = vst [vmem:[%s3 + $0x78] sm:$0xff] %v351
    %v368 = vadd.f32 %v336, %v337
    %v369 = vadd.f32 %v368, %v338
    %v370 = vadd.f32 %v369, %v339
    %v371 = vadd.f32 %v370, %v340
    %v372 = vadd.f32 %v371, %v341
    %v373 = vadd.f32 %v372, %v342
    %v374 = vadd.f32 %v373, %v343
    %v375 = vadd.f32 %v374, %v344
    %v376 = vadd.f32 %v375, %v345
    %v377 = vadd.f32 %v376, %v346
    %v378 = vadd.f32 %v377, %v347
    %v379 = vadd.f32 %v378, %v348
    %v380 = vadd.f32 %v379, %v349
    %v381 = vadd.f32 %v380, %v350
    %v382 = vadd.f32 %v381, %v351
    %v383 = vrot.slane %v382, 4
    %v384 = vadd.f32 %v382, %v383
    %v385 = vrot.slane %v384, 2
    %v386 = vadd.f32 %v384, %v385
    %v387 = vrot.slane %v386, 1
    %v388 = vadd.f32 %v386, %v387
    %v389 = vmul.f32 %v336, %v336
    %v390 = vmul.f32 %v337, %v337
    %v391 = vmul.f32 %v338, %v338
    %v392 = vmul.f32 %v339, %v339
    %v393 = vmul.f32 %v340, %v340
    %v394 = vmul.f32 %v341, %v341
    %v395 = vmul.f32 %v342, %v342
    %v396 = vmul.f32 %v343, %v343
    %v397 = vmul.f32 %v344, %v344
    %v398 = vmul.f32 %v345, %v345
    %v399 = vmul.f32 %v346, %v346
    %v400 = vmul.f32 %v347, %v347
    %v401 = vmul.f32 %v348, %v348
    %v402 = vmul.f32 %v349, %v349
    %v403 = vmul.f32 %v350, %v350
    %v404 = vmul.f32 %v351, %v351
    %v405 = vadd.f32 %v389, %v390
    %v406 = vadd.f32 %v405, %v391
    %v407 = vadd.f32 %v406, %v392
    %v408 = vadd.f32 %v407, %v393
    %v409 = vadd.f32 %v408, %v394
    %v410 = vadd.f32 %v409, %v395
    %v411 = vadd.f32 %v410, %v396
    %v412 = vadd.f32 %v411, %v397
    %v413 = vadd.f32 %v412, %v398
    %v414 = vadd.f32 %v413, %v399
    %v415 = vadd.f32 %v414, %v400
    %v416 = vadd.f32 %v415, %v401
    %v417 = vadd.f32 %v416, %v402
    %v418 = vadd.f32 %v417, %v403
    %v419 = vadd.f32 %v418, %v404
    %v420 = vrot.slane %v419, 4
    %v421 = vadd.f32 %v419, %v420
    %v422 = vrot.slane %v421, 2
    %v423 = vadd.f32 %v421, %v422
    %v424 = vrot.slane %v423, 1
    %v425 = vadd.f32 %v423, %v424
    %v426 = vlaneseq
    %v427 = vshrl.u32 %v426, 7
    %vm428 = vcmp.eq.s32.totalorder %v427, 0
    %vm429 = vcmp.eq.s32.totalorder %v427, 1
    %v430 = vsel %vm429, %v425, 0.0
    %v431 = vsel %vm428, %v388, %v430
    %432 = vst [vmem:[%s4] sm:$0xff] %v431
  $region21: #{basicblock_forward.6} parent=0 // pred_fallthru
    _
  // Predicated region
  $region22: #{basicblock_forward.6} parent=0 // pred_check
    _
  $region23: #{basicblock_forward.6} parent=0 // pred_check_branch
    %434 = sbr.rel (0) target = $region25
  $region24: #{basicblock_forward.6} parent=0 // pred_region
    _
  $region25: #{basicblock_forward.6} parent=0 // pred_fallthru
    _
  // Predicated region
  $region26: #{basicblock_forward.6} parent=0 // pred_check
    _
  $region27: #{basicblock_forward.6} parent=0 // pred_check_branch
    %436 = sbr.rel (0) target = $region29
  $region28: #{basicblock_forward.6} parent=0 // pred_region
    _
  $region29: #{basicblock_forward.6} parent=0 // pred_fallthru
    _
  // Predicated region
  $region30: #{basicblock_forward.6} parent=0 // pred_check
    _
  $region31: #{basicblock_forward.6} parent=0 // pred_check_branch
    %438 = sbr.rel (0) target = $region33
  $region32: #{basicblock_forward.6} parent=0 // pred_region
    _
  $region33: #{basicblock_forward.6} parent=0 // pred_fallthru
    _
  // Predicated region
  $region34: #{basicblock_forward.6} parent=0 // pred_check
    _
  $region35: #{basicblock_forward.6} parent=0 // pred_check_branch
    %440 = sbr.rel (0) target = $region37
  $region36: #{basicblock_forward.6} parent=0 // pred_region
    _
  $region37: #{basicblock_forward.6} parent=0 // pred_fallthru
    _

</llo_original>
